<compile_context>
chip_gen: v7x
topology: tpu7x:2x2x1
jax: 0.10.0
libtpu: 0.0.40
codegen_flags: <defaults>
</compile_context>

<pallas_src>
import functools

import jax
import jax.numpy as jnp
from jax.experimental import pallas as pl
from jax.experimental.pallas import tpu as pltpu


def _layernorm(x, gamma, beta, eps=1e-5):
    # PyTorch LayerNorm: biased variance over the last dim, eps inside rsqrt.
    mean = jnp.mean(x, axis=-1, keepdims=True)
    var = jnp.mean((x - mean) ** 2, axis=-1, keepdims=True)
    return (x - mean) * jax.lax.rsqrt(var + eps) * gamma + beta


def _mish(x):
    # Mish(x) = x * tanh(softplus(x)).  With e = exp(x):
    #   tanh(softplus(x)) = (e^2 + 2e) / (e^2 + 2e + 2)
    # -> one EUP exp + one approx reciprocal per element (instead of exp+log1p+tanh).
    # PyTorch softplus threshold=20 passthrough kept; approx reciprocal gives ~2^-12
    # relative error (documented deviation, inference-acceptable).
    e = jnp.exp(jnp.minimum(x, 20.0))
    num = e * (e + 2.0)
    t = num * pl.reciprocal(num + 2.0, approx=True)
    return jnp.where(x > 20.0, x, x * t)


def transformer_block_kernel(
    x_ref, cond_ref,
    wq_ref, bq_ref, wkv_ref, bkv_ref,
    wo_ref, bo_ref,
    g1_ref, be1_ref,
    w1_ref, b1_ref, w2_ref, b2_ref,
    g2_ref, be2_ref,
    o_ref,
    kh_ref, vh_ref, qh_ref,
    *, num_heads,
):
    f32, bf16 = jnp.float32, jnp.bfloat16

    x = x_ref[...].astype(f32)                 # (TQ, E) f32 for residual / LayerNorm
    TQ, E = x.shape
    H = num_heads
    Dh = E // H

    # ---- K/V projection: computed once per batch element (qi == 0), cached ----
    # Fused [Wk|Wv] matmul keeps the MXU fed (N = 2E), cond is read directly in bf16.
    @pl.when(pl.program_id(1) == 0)
    def _():
        c16 = cond_ref[...]                                              # (Lkv, E) bf16
        kv = jnp.dot(c16, wkv_ref[...], preferred_element_type=f32) + bkv_ref[...]
        kv16 = kv.astype(bf16)                                           # (Lkv, 2E)
        for h in range(H):                                               # head split (static lane slices)
            kh_ref[h] = kv16[:, h * Dh:(h + 1) * Dh]
            vh_ref[h] = kv16[:, E + h * Dh:E + (h + 1) * Dh]

    # ---- Q projection (1/sqrt(Dh) folded into wq/bq by the wrapper), fused matmul ----
    q = jnp.dot(x.astype(bf16), wq_ref[...], preferred_element_type=f32) + bq_ref[...]
    q16 = q.astype(bf16)                                                 # (TQ, E)
    for h in range(H):
        qh_ref[h] = q16[:, h * Dh:(h + 1) * Dh]                          # (H, TQ, Dh)

    # ---- Scores + softmax (f32), batched over heads ----
    s = jnp.einsum('hqd,hkd->hqk', qh_ref[...], kh_ref[...],
                   preferred_element_type=f32)                           # (H, TQ, Lkv)
    s = s - jnp.max(s, axis=-1, keepdims=True)
    p = jnp.exp(s)
    # approx reciprocal: rows sum to 1 only to ~2^-12 (documented deviation).
    p = p * pl.reciprocal(jnp.sum(p, axis=-1, keepdims=True), approx=True)

    # ---- Attention output; head reduction fused into the output projection ----
    oh = jnp.einsum('hqk,hkd->hqd', p.astype(bf16), vh_ref[...],
                    preferred_element_type=f32)                          # (H, TQ, Dh)
    oh16 = oh.astype(bf16)
    attn = jnp.dot(oh16[0], wo_ref[0], preferred_element_type=f32)       # (TQ, E) f32 acc
    for h in range(1, H):
        attn = attn + jnp.dot(oh16[h], wo_ref[h], preferred_element_type=f32)
    attn = attn + bo_ref[...]

    # ---- Residual + norm1 ----
    x1 = _layernorm(x + attn, g1_ref[...], be1_ref[...])

    # ---- Feed-forward: linear2(dropout(mish(linear1(x1)))); dropout = identity ----
    h1 = jnp.dot(x1.astype(bf16), w1_ref[...], preferred_element_type=f32) + b1_ref[...]
    ff = jnp.dot(_mish(h1).astype(bf16), w2_ref[...], preferred_element_type=f32) + b2_ref[...]

    # ---- Residual + norm2 ----
    o_ref[...] = _layernorm(x1 + ff, g2_ref[...], be2_ref[...]).astype(o_ref.dtype)


def _vmem_capacity_bytes():
    # Generation-aware physical VMEM (v5e/v6e: 128 MiB, v7x: 64 MiB per core).
    # The try/except only guards the hardware query; it defaults to the smaller
    # (v7x) budget, which is always safe.
    try:
        cap = int(pltpu.get_tpu_info().vmem_capacity_bytes)
        if cap > 0:
            return cap
    except Exception:
        pass
    return 64 * 1024 * 1024


def _tile_footprint_bytes(tq, lkv, e, hf, h, dh):
    """Rough per-grid-step VMEM footprint (weights + pipelined IO + intermediates)."""
    b16, b32 = 2, 4
    weights = 2 * ((e * e + 2 * e * e + h * dh * e + e * hf + hf * hf) * b16
                   + (3 * e + 2 * e + 2 * hf + 2 * hf) * b32)           # x2: double-buffered
    io = 2 * (tq * e * b32 + lkv * e * b16 + tq * hf * b32)             # x, cond, out
    scratch = (2 * h * lkv * dh + h * tq * dh) * b16                    # K/V cache + Q heads
    inter = (lkv * 2 * e * b32                                          # fused K/V proj (f32)
             + 2 * tq * e * (b32 + b16)                                 # x/q f32 + bf16 copies
             + 2 * h * tq * lkv * b32 + h * tq * lkv * b16              # scores, probs, probs16
             + h * tq * dh * (b32 + b16)                                # oh, oh16
             + 2 * tq * e * b32                                         # attn acc, x1
             + 3 * tq * hf * b32)                                       # h1, mish, ff
    return weights + io + scratch + inter


def _pick_tq(lq, footprint_fn, target_bytes):
    """Largest legal query tile (multiple of 8 dividing Lq, or the full Lq) fitting budget."""
    cands = []
    if lq <= 1024:
        cands.append(lq)                                   # full-extent block is always legal
    cands += [t for t in range(1024, 7, -8) if t < lq and lq % t == 0]
    if not cands:
        # Awkward Lq (> 1024, no multiple-of-8 divisor <= 1024): single full block.
        cands = [lq]
    for t in cands:
        if footprint_fn(t) <= target_bytes:
            return t
    return cands[-1]


def transformer_block_conditioned(x, condition, params, num_heads):
    B, Lq, E = x.shape
    Bc, Lkv, Ec = condition.shape
    assert Bc == B and Ec == E
    assert E % num_heads == 0, "embed_dim must be divisible by num_heads"
    H = num_heads
    Dh = E // H
    Hf = params["w1"].shape[1]
    assert Hf == E, "module semantics require input_dim == hidden_dim"

    f32, bf16 = jnp.float32, jnp.bfloat16
    scale = 1.0 / (Dh ** 0.5)

    # --- Parameter prep (host-side; precompute once in real use) ---
    wq = (params["wq"].astype(f32) * scale).astype(bf16)                 # (E, E), scale folded
    bq = params["bq"].reshape(1, E).astype(f32) * scale                  # (1, E), scale folded
    wkv = jnp.concatenate([params["wk"], params["wv"]], axis=1).astype(bf16)   # (E, 2E)
    bkv = jnp.concatenate([params["bk"].reshape(1, E),
                           params["bv"].reshape(1, E)], axis=1).astype(f32)    # (1, 2E)
    wo = params["wo"].astype(f32).reshape(H, Dh, E).astype(bf16)         # (H, Dh, E)
    bo = params["bo"].reshape(1, E).astype(f32)
    g1 = params["g1"].reshape(1, E).astype(f32)
    be1 = params["be1"].reshape(1, E).astype(f32)
    w1 = params["w1"].astype(bf16)                                       # (E, Hf)
    b1 = params["b1"].reshape(1, Hf).astype(f32)
    w2 = params["w2"].astype(bf16)                                       # (Hf(=E), Hf)
    b2 = params["b2"].reshape(1, Hf).astype(f32)
    g2 = params["g2"].reshape(1, Hf).astype(f32)
    be2 = params["be2"].reshape(1, Hf).astype(f32)

    weights = [wq, bq, wkv, bkv, wo, bo, g1, be1, w1, b1, w2, b2, g2, be2]

    # condition is only ever consumed in bf16: cast once, halve the DMA bytes.
    cond_bf16 = condition.astype(bf16)

    # --- Generation-aware tiling / VMEM budget ---
    cap = _vmem_capacity_bytes()
    target = (3 * cap) // 4
    fp = functools.partial(_tile_footprint_bytes, lkv=Lkv, e=E, hf=Hf, h=H, dh=Dh)
    TQ = _pick_tq(Lq, fp, target)
    assert Lq % TQ == 0
    num_q_tiles = Lq // TQ
    vmem_limit = int(min((9 * cap) // 10, max(32 * 1024 * 1024, 2 * fp(TQ))))

    def wspec(a):
        return pl.BlockSpec(a.shape, lambda b, qi, _n=a.ndim: (0,) * _n)

    in_specs = [
        pl.BlockSpec((None, TQ, E), lambda b, qi: (b, qi, 0)),           # x (query tile)
        pl.BlockSpec((None, Lkv, E), lambda b, qi: (b, 0, 0)),           # condition (full, bf16)
    ] + [wspec(a) for a in weights]

    out_specs = pl.BlockSpec((None, TQ, Hf), lambda b, qi: (b, qi, 0))

    kernel = functools.partial(transformer_block_kernel, num_heads=H)

    return pl.pallas_call(
        kernel,
        out_shape=jax.ShapeDtypeStruct((B, Lq, Hf), x.dtype),
        grid=(B, num_q_tiles),
        in_specs=in_specs,
        out_specs=out_specs,
        scratch_shapes=[
            pltpu.VMEM((H, Lkv, Dh), bf16),     # cached K heads (per batch element)
            pltpu.VMEM((H, Lkv, Dh), bf16),     # cached V heads
            pltpu.VMEM((H, TQ, Dh), bf16),      # Q heads staging (per query tile)
        ],
        compiler_params=pltpu.CompilerParams(
            # batch axis can shard across cores; q-tile axis must stay sequential so
            # the qi==0 K/V computation precedes its reuse within each batch element.
            dimension_semantics=("parallel", "arbitrary"),
            vmem_limit_bytes=vmem_limit),
    )(x, cond_bf16, *weights)


def make_params(key, input_dim, hidden_dim):
    """Deterministic synthetic parameters matching the PyTorch module's shapes."""
    E, H = input_dim, hidden_dim
    ks = jax.random.split(key, 10)

    def w(k, shape, s=0.1):
        return jax.random.normal(k, shape, jnp.float32) * s

    # nn.MultiheadAttention: in_proj_weight (3E, E), in_proj_bias (3E,)
    in_proj_w = w(ks[0], (3 * E, E))
    in_proj_b = w(ks[1], (3 * E,))
    # out_proj: Linear(E, E)
    out_w = w(ks[2], (E, E))
    out_b = w(ks[3], (E,))
    # linear1: Linear(E, H), linear2: Linear(E, H)
    w1 = w(ks[4], (H, E))
    b1 = w(ks[5], (H,))
    w2 = w(ks[6], (H, E))
    b2 = w(ks[7], (H,))

    return {
        # pre-transposed to (in, out); biases as (1, out)
        "wq": in_proj_w[:E].T,
        "wk": in_proj_w[E:2 * E].T,
        "wv": in_proj_w[2 * E:].T,
        "bq": in_proj_b[:E].reshape(1, E),
        "bk": in_proj_b[E:2 * E].reshape(1, E),
        "bv": in_proj_b[2 * E:].reshape(1, E),
        "wo": out_w.T,
        "bo": out_b.reshape(1, E),
        "g1": jnp.ones((1, E), jnp.float32),
        "be1": jnp.zeros((1, E), jnp.float32),
        "w1": w1.T,
        "b1": b1.reshape(1, H),
        "w2": w2.T,
        "b2": b2.reshape(1, H),
        "g2": jnp.ones((1, H), jnp.float32),
        "be2": jnp.zeros((1, H), jnp.float32),
    }


if __name__ == "__main__":
    key = jax.random.PRNGKey(0)
    B, Lq, Lkv = 2, 8, 8
    input_dim = hidden_dim = 32             # module requires input_dim == hidden_dim
    num_heads = min(input_dim // 8, 8)      # = 4, as in the module's default

    k_x, k_c, k_p = jax.random.split(key, 3)
    x = jax.random.normal(k_x, (B, Lq, input_dim), jnp.float32)
    condition = jax.random.normal(k_c, (B, Lkv, input_dim), jnp.float32)
    params = make_params(k_p, input_dim, hidden_dim)

    out = transformer_block_conditioned(x, condition, params, num_heads)
    out = jax.block_until_ready(out)
    assert out.shape == (B, Lq, hidden_dim)
    assert bool(jnp.all(jnp.isfinite(out)))
    print("KERNEL_OK")
</pallas_src>

<mosaic_0001>
module attributes {stable_mosaic.version = 11 : i64} {
  func.func @transformer_block_kernel(%arg0: i32, %arg1: i32, %arg2: memref<1x8x32xf32, #tpu.memory_space<vmem>>, %arg3: memref<1x8x32xbf16, #tpu.memory_space<vmem>>, %arg4: memref<32x32xbf16, #tpu.memory_space<vmem>>, %arg5: memref<1x32xf32, #tpu.memory_space<vmem>>, %arg6: memref<32x64xbf16, #tpu.memory_space<vmem>>, %arg7: memref<1x64xf32, #tpu.memory_space<vmem>>, %arg8: memref<4x8x32xbf16, #tpu.memory_space<vmem>>, %arg9: memref<1x32xf32, #tpu.memory_space<vmem>>, %arg10: memref<1x32xf32, #tpu.memory_space<vmem>>, %arg11: memref<1x32xf32, #tpu.memory_space<vmem>>, %arg12: memref<32x32xbf16, #tpu.memory_space<vmem>>, %arg13: memref<1x32xf32, #tpu.memory_space<vmem>>, %arg14: memref<32x32xbf16, #tpu.memory_space<vmem>>, %arg15: memref<1x32xf32, #tpu.memory_space<vmem>>, %arg16: memref<1x32xf32, #tpu.memory_space<vmem>>, %arg17: memref<1x32xf32, #tpu.memory_space<vmem>>, %arg18: memref<1x8x32xf32, #tpu.memory_space<vmem>>, %arg19: memref<4x8x8xbf16, #tpu.memory_space<vmem>>, %arg20: memref<4x8x8xbf16, #tpu.memory_space<vmem>>, %arg21: memref<4x8x8xbf16, #tpu.memory_space<vmem>>) attributes {dimension_semantics = [#tpu.dimension_semantics<parallel>, #tpu.dimension_semantics<arbitrary>], iteration_bounds = array<i64: 2, 1>, scalar_prefetch = 0 : i64, scratch_operands = 3 : i64, tpu.core_type = #tpu.core_type<tc>, window_params = [{transform_indices = @transform_0, window_bounds = array<i64: 1, 8, 32>}, {transform_indices = @transform_1, window_bounds = array<i64: 1, 8, 32>}, {pipeline_mode = #tpu.pipeline_mode<synchronous>, transform_indices = @transform_2, window_bounds = array<i64: 32, 32>}, {pipeline_mode = #tpu.pipeline_mode<synchronous>, transform_indices = @transform_3, window_bounds = array<i64: 1, 32>}, {pipeline_mode = #tpu.pipeline_mode<synchronous>, transform_indices = @transform_4, window_bounds = array<i64: 32, 64>}, {pipeline_mode = #tpu.pipeline_mode<synchronous>, transform_indices = @transform_5, window_bounds = array<i64: 1, 64>}, {pipeline_mode = #tpu.pipeline_mode<synchronous>, transform_indices = @transform_6, window_bounds = array<i64: 4, 8, 32>}, {pipeline_mode = #tpu.pipeline_mode<synchronous>, transform_indices = @transform_7, window_bounds = array<i64: 1, 32>}, {pipeline_mode = #tpu.pipeline_mode<synchronous>, transform_indices = @transform_8, window_bounds = array<i64: 1, 32>}, {pipeline_mode = #tpu.pipeline_mode<synchronous>, transform_indices = @transform_9, window_bounds = array<i64: 1, 32>}, {pipeline_mode = #tpu.pipeline_mode<synchronous>, transform_indices = @transform_10, window_bounds = array<i64: 32, 32>}, {pipeline_mode = #tpu.pipeline_mode<synchronous>, transform_indices = @transform_11, window_bounds = array<i64: 1, 32>}, {pipeline_mode = #tpu.pipeline_mode<synchronous>, transform_indices = @transform_12, window_bounds = array<i64: 32, 32>}, {pipeline_mode = #tpu.pipeline_mode<synchronous>, transform_indices = @transform_13, window_bounds = array<i64: 1, 32>}, {pipeline_mode = #tpu.pipeline_mode<synchronous>, transform_indices = @transform_14, window_bounds = array<i64: 1, 32>}, {pipeline_mode = #tpu.pipeline_mode<synchronous>, transform_indices = @transform_15, window_bounds = array<i64: 1, 32>}, {transform_indices = @transform_16, window_bounds = array<i64: 1, 8, 32>}]} {
    %c0 = arith.constant 0 : index
    %c0_0 = arith.constant 0 : index
    %c0_1 = arith.constant 0 : index
    %0 = vector.load %arg2[%c0, %c0_0, %c0_1] : memref<1x8x32xf32, #tpu.memory_space<vmem>>, vector<1x8x32xf32>
    %1 = vector.shape_cast %0 : vector<1x8x32xf32> to vector<8x32xf32>
    %c0_i32 = arith.constant 0 : i32
    %2 = arith.cmpi eq, %arg1, %c0_i32 : i32
    %3 = arith.extui %2 : i1 to i32
    %c0_i32_2 = arith.constant 0 : i32
    %4 = arith.cmpi ne, %3, %c0_i32_2 : i32
    scf.if %4 {
      %c0_82 = arith.constant 0 : index
      %c0_83 = arith.constant 0 : index
      %c0_84 = arith.constant 0 : index
      %150 = vector.load %arg3[%c0_82, %c0_83, %c0_84] : memref<1x8x32xbf16, #tpu.memory_space<vmem>>, vector<1x8x32xbf16>
      %151 = vector.shape_cast %150 : vector<1x8x32xbf16> to vector<8x32xbf16>
      %c0_85 = arith.constant 0 : index
      %c0_86 = arith.constant 0 : index
      %152 = vector.load %arg6[%c0_85, %c0_86] : memref<32x64xbf16, #tpu.memory_space<vmem>>, vector<32x64xbf16>
      %cst_87 = arith.constant dense<0.000000e+00> : vector<8x64xf32>
      %153 = tpu.matmul %151, %152, %cst_87 {dimension_numbers = #tpu.dot_dimension_numbers<[1], [0], [0], [1], [0, 0, 1, 1], [], []>} : vector<8x32xbf16>, vector<32x64xbf16>, vector<8x64xf32> -> vector<8x64xf32>
      %c0_88 = arith.constant 0 : index
      %c0_89 = arith.constant 0 : index
      %154 = vector.load %arg7[%c0_88, %c0_89] : memref<1x64xf32, #tpu.memory_space<vmem>>, vector<1x64xf32>
      %155 = vector.broadcast %154 : vector<1x64xf32> to vector<8x64xf32>
      %156 = arith.addf %153, %155 : vector<8x64xf32>
      %157 = arith.truncf %156 : vector<8x64xf32> to vector<8x64xbf16>
      %158 = vector.extract_strided_slice %157 {offsets = [0, 0], sizes = [8, 8], strides = [1, 1]} : vector<8x64xbf16> to vector<8x8xbf16>
      %c0_90 = arith.constant 0 : index
      %c0_91 = arith.constant 0 : index
      %c0_92 = arith.constant 0 : index
      %159 = vector.load %arg19[%c0_90, %c0_91, %c0_92] : memref<4x8x8xbf16, #tpu.memory_space<vmem>>, vector<1x8x8xbf16>
      %160 = vector.shape_cast %159 : vector<1x8x8xbf16> to vector<8x8xbf16>
      %161 = vector.shape_cast %158 : vector<8x8xbf16> to vector<1x8x8xbf16>
      tpu.vector_store %arg19[%c0_90, %c0_91, %c0_92], %161 {strides = array<i32>} : memref<4x8x8xbf16, #tpu.memory_space<vmem>>, vector<1x8x8xbf16>,
      %162 = vector.extract_strided_slice %157 {offsets = [0, 32], sizes = [8, 8], strides = [1, 1]} : vector<8x64xbf16> to vector<8x8xbf16>
      %c0_93 = arith.constant 0 : index
      %c0_94 = arith.constant 0 : index
      %c0_95 = arith.constant 0 : index
      %163 = vector.load %arg20[%c0_93, %c0_94, %c0_95] : memref<4x8x8xbf16, #tpu.memory_space<vmem>>, vector<1x8x8xbf16>
      %164 = vector.shape_cast %163 : vector<1x8x8xbf16> to vector<8x8xbf16>
      %165 = vector.shape_cast %162 : vector<8x8xbf16> to vector<1x8x8xbf16>
      tpu.vector_store %arg20[%c0_93, %c0_94, %c0_95], %165 {strides = array<i32>} : memref<4x8x8xbf16, #tpu.memory_space<vmem>>, vector<1x8x8xbf16>,
      %166 = vector.extract_strided_slice %157 {offsets = [0, 8], sizes = [8, 8], strides = [1, 1]} : vector<8x64xbf16> to vector<8x8xbf16>
      %c1_96 = arith.constant 1 : index
      %c0_97 = arith.constant 0 : index
      %c0_98 = arith.constant 0 : index
      %167 = vector.load %arg19[%c1_96, %c0_97, %c0_98] : memref<4x8x8xbf16, #tpu.memory_space<vmem>>, vector<1x8x8xbf16>
      %168 = vector.shape_cast %167 : vector<1x8x8xbf16> to vector<8x8xbf16>
      %169 = vector.shape_cast %166 : vector<8x8xbf16> to vector<1x8x8xbf16>
      tpu.vector_store %arg19[%c1_96, %c0_97, %c0_98], %169 {strides = array<i32>} : memref<4x8x8xbf16, #tpu.memory_space<vmem>>, vector<1x8x8xbf16>,
      %170 = vector.extract_strided_slice %157 {offsets = [0, 40], sizes = [8, 8], strides = [1, 1]} : vector<8x64xbf16> to vector<8x8xbf16>
      %c1_99 = arith.constant 1 : index
      %c0_100 = arith.constant 0 : index
      %c0_101 = arith.constant 0 : index
      %171 = vector.load %arg20[%c1_99, %c0_100, %c0_101] : memref<4x8x8xbf16, #tpu.memory_space<vmem>>, vector<1x8x8xbf16>
      %172 = vector.shape_cast %171 : vector<1x8x8xbf16> to vector<8x8xbf16>
      %173 = vector.shape_cast %170 : vector<8x8xbf16> to vector<1x8x8xbf16>
      tpu.vector_store %arg20[%c1_99, %c0_100, %c0_101], %173 {strides = array<i32>} : memref<4x8x8xbf16, #tpu.memory_space<vmem>>, vector<1x8x8xbf16>,
      %174 = vector.extract_strided_slice %157 {offsets = [0, 16], sizes = [8, 8], strides = [1, 1]} : vector<8x64xbf16> to vector<8x8xbf16>
      %c2_102 = arith.constant 2 : index
      %c0_103 = arith.constant 0 : index
      %c0_104 = arith.constant 0 : index
      %175 = vector.load %arg19[%c2_102, %c0_103, %c0_104] : memref<4x8x8xbf16, #tpu.memory_space<vmem>>, vector<1x8x8xbf16>
      %176 = vector.shape_cast %175 : vector<1x8x8xbf16> to vector<8x8xbf16>
      %177 = vector.shape_cast %174 : vector<8x8xbf16> to vector<1x8x8xbf16>
      tpu.vector_store %arg19[%c2_102, %c0_103, %c0_104], %177 {strides = array<i32>} : memref<4x8x8xbf16, #tpu.memory_space<vmem>>, vector<1x8x8xbf16>,
      %178 = vector.extract_strided_slice %157 {offsets = [0, 48], sizes = [8, 8], strides = [1, 1]} : vector<8x64xbf16> to vector<8x8xbf16>
      %c2_105 = arith.constant 2 : index
      %c0_106 = arith.constant 0 : index
      %c0_107 = arith.constant 0 : index
      %179 = vector.load %arg20[%c2_105, %c0_106, %c0_107] : memref<4x8x8xbf16, #tpu.memory_space<vmem>>, vector<1x8x8xbf16>
      %180 = vector.shape_cast %179 : vector<1x8x8xbf16> to vector<8x8xbf16>
      %181 = vector.shape_cast %178 : vector<8x8xbf16> to vector<1x8x8xbf16>
      tpu.vector_store %arg20[%c2_105, %c0_106, %c0_107], %181 {strides = array<i32>} : memref<4x8x8xbf16, #tpu.memory_space<vmem>>, vector<1x8x8xbf16>,
      %182 = vector.extract_strided_slice %157 {offsets = [0, 24], sizes = [8, 8], strides = [1, 1]} : vector<8x64xbf16> to vector<8x8xbf16>
      %c3_108 = arith.constant 3 : index
      %c0_109 = arith.constant 0 : index
      %c0_110 = arith.constant 0 : index
      %183 = vector.load %arg19[%c3_108, %c0_109, %c0_110] : memref<4x8x8xbf16, #tpu.memory_space<vmem>>, vector<1x8x8xbf16>
      %184 = vector.shape_cast %183 : vector<1x8x8xbf16> to vector<8x8xbf16>
      %185 = vector.shape_cast %182 : vector<8x8xbf16> to vector<1x8x8xbf16>
      tpu.vector_store %arg19[%c3_108, %c0_109, %c0_110], %185 {strides = array<i32>} : memref<4x8x8xbf16, #tpu.memory_space<vmem>>, vector<1x8x8xbf16>,
      %186 = vector.extract_strided_slice %157 {offsets = [0, 56], sizes = [8, 8], strides = [1, 1]} : vector<8x64xbf16> to vector<8x8xbf16>
      %c3_111 = arith.constant 3 : index
      %c0_112 = arith.constant 0 : index
      %c0_113 = arith.constant 0 : index
      %187 = vector.load %arg20[%c3_111, %c0_112, %c0_113] : memref<4x8x8xbf16, #tpu.memory_space<vmem>>, vector<1x8x8xbf16>
      %188 = vector.shape_cast %187 : vector<1x8x8xbf16> to vector<8x8xbf16>
      %189 = vector.shape_cast %186 : vector<8x8xbf16> to vector<1x8x8xbf16>
      tpu.vector_store %arg20[%c3_111, %c0_112, %c0_113], %189 {strides = array<i32>} : memref<4x8x8xbf16, #tpu.memory_space<vmem>>, vector<1x8x8xbf16>,
    } else {
    }
    %5 = arith.truncf %1 : vector<8x32xf32> to vector<8x32xbf16>
    %c0_3 = arith.constant 0 : index
    %c0_4 = arith.constant 0 : index
    %6 = vector.load %arg4[%c0_3, %c0_4] : memref<32x32xbf16, #tpu.memory_space<vmem>>, vector<32x32xbf16>
    %cst = arith.constant dense<0.000000e+00> : vector<8x32xf32>
    %7 = tpu.matmul %5, %6, %cst {dimension_numbers = #tpu.dot_dimension_numbers<[1], [0], [0], [1], [0, 0, 1, 1], [], []>} : vector<8x32xbf16>, vector<32x32xbf16>, vector<8x32xf32> -> vector<8x32xf32>
    %c0_5 = arith.constant 0 : index
    %c0_6 = arith.constant 0 : index
    %8 = vector.load %arg5[%c0_5, %c0_6] : memref<1x32xf32, #tpu.memory_space<vmem>>, vector<1x32xf32>
    %9 = vector.broadcast %8 : vector<1x32xf32> to vector<8x32xf32>
    %10 = arith.addf %7, %9 : vector<8x32xf32>
    %11 = arith.truncf %10 : vector<8x32xf32> to vector<8x32xbf16>
    %12 = vector.extract_strided_slice %11 {offsets = [0, 0], sizes = [8, 8], strides = [1, 1]} : vector<8x32xbf16> to vector<8x8xbf16>
    %c0_7 = arith.constant 0 : index
    %c0_8 = arith.constant 0 : index
    %c0_9 = arith.constant 0 : index
    %13 = vector.load %arg21[%c0_7, %c0_8, %c0_9] : memref<4x8x8xbf16, #tpu.memory_space<vmem>>, vector<1x8x8xbf16>
    %14 = vector.shape_cast %13 : vector<1x8x8xbf16> to vector<8x8xbf16>
    %15 = vector.shape_cast %12 : vector<8x8xbf16> to vector<1x8x8xbf16>
    tpu.vector_store %arg21[%c0_7, %c0_8, %c0_9], %15 {strides = array<i32>} : memref<4x8x8xbf16, #tpu.memory_space<vmem>>, vector<1x8x8xbf16>,
    %16 = vector.extract_strided_slice %11 {offsets = [0, 8], sizes = [8, 8], strides = [1, 1]} : vector<8x32xbf16> to vector<8x8xbf16>
    %c1 = arith.constant 1 : index
    %c0_10 = arith.constant 0 : index
    %c0_11 = arith.constant 0 : index
    %17 = vector.load %arg21[%c1, %c0_10, %c0_11] : memref<4x8x8xbf16, #tpu.memory_space<vmem>>, vector<1x8x8xbf16>
    %18 = vector.shape_cast %17 : vector<1x8x8xbf16> to vector<8x8xbf16>
    %19 = vector.shape_cast %16 : vector<8x8xbf16> to vector<1x8x8xbf16>
    tpu.vector_store %arg21[%c1, %c0_10, %c0_11], %19 {strides = array<i32>} : memref<4x8x8xbf16, #tpu.memory_space<vmem>>, vector<1x8x8xbf16>,
    %20 = vector.extract_strided_slice %11 {offsets = [0, 16], sizes = [8, 8], strides = [1, 1]} : vector<8x32xbf16> to vector<8x8xbf16>
    %c2 = arith.constant 2 : index
    %c0_12 = arith.constant 0 : index
    %c0_13 = arith.constant 0 : index
    %21 = vector.load %arg21[%c2, %c0_12, %c0_13] : memref<4x8x8xbf16, #tpu.memory_space<vmem>>, vector<1x8x8xbf16>
    %22 = vector.shape_cast %21 : vector<1x8x8xbf16> to vector<8x8xbf16>
    %23 = vector.shape_cast %20 : vector<8x8xbf16> to vector<1x8x8xbf16>
    tpu.vector_store %arg21[%c2, %c0_12, %c0_13], %23 {strides = array<i32>} : memref<4x8x8xbf16, #tpu.memory_space<vmem>>, vector<1x8x8xbf16>,
    %24 = vector.extract_strided_slice %11 {offsets = [0, 24], sizes = [8, 8], strides = [1, 1]} : vector<8x32xbf16> to vector<8x8xbf16>
    %c3 = arith.constant 3 : index
    %c0_14 = arith.constant 0 : index
    %c0_15 = arith.constant 0 : index
    %25 = vector.load %arg21[%c3, %c0_14, %c0_15] : memref<4x8x8xbf16, #tpu.memory_space<vmem>>, vector<1x8x8xbf16>
    %26 = vector.shape_cast %25 : vector<1x8x8xbf16> to vector<8x8xbf16>
    %27 = vector.shape_cast %24 : vector<8x8xbf16> to vector<1x8x8xbf16>
    tpu.vector_store %arg21[%c3, %c0_14, %c0_15], %27 {strides = array<i32>} : memref<4x8x8xbf16, #tpu.memory_space<vmem>>, vector<1x8x8xbf16>,
    %c0_16 = arith.constant 0 : index
    %c0_17 = arith.constant 0 : index
    %c0_18 = arith.constant 0 : index
    %28 = vector.load %arg21[%c0_16, %c0_17, %c0_18] : memref<4x8x8xbf16, #tpu.memory_space<vmem>>, vector<4x8x8xbf16>
    %c0_19 = arith.constant 0 : index
    %c0_20 = arith.constant 0 : index
    %c0_21 = arith.constant 0 : index
    %29 = vector.load %arg19[%c0_19, %c0_20, %c0_21] : memref<4x8x8xbf16, #tpu.memory_space<vmem>>, vector<4x8x8xbf16>
    "tpu.trace_start"() <{level = 10 : i32, message = "hqd,hkd->hqk"}> : () -> ()
    %cst_22 = arith.constant dense<0.000000e+00> : vector<4x8x8xf32>
    %30 = tpu.matmul %28, %29, %cst_22 {dimension_numbers = #tpu.dot_dimension_numbers<[2], [2], [1], [1], [0, 0, 0, 1, 1, 1], [0], [0]>} : vector<4x8x8xbf16>, vector<4x8x8xbf16>, vector<4x8x8xf32> -> vector<4x8x8xf32>
    "tpu.trace_stop"() : () -> ()
    %cst_23 = arith.constant dense<0xFF800000> : vector<4x8xf32>
    %31 = vector.multi_reduction <maximumf>, %30, %cst_23 [2] : vector<4x8x8xf32> to vector<4x8xf32>
    %32 = vector.shape_cast %31 : vector<4x8xf32> to vector<4x8x1xf32>
    %33 = vector.broadcast %32 : vector<4x8x1xf32> to vector<4x8x8xf32>
    %34 = arith.subf %30, %33 : vector<4x8x8xf32>
    %35 = math.exp %34 : vector<4x8x8xf32>
    %cst_24 = arith.constant dense<0.000000e+00> : vector<4x8xf32>
    %36 = vector.multi_reduction <add>, %35, %cst_24 [2] : vector<4x8x8xf32> to vector<4x8xf32>
    %37 = vector.shape_cast %36 : vector<4x8xf32> to vector<4x8x1xf32>
    %38 = tpu.reciprocal %37 {approx = true} : vector<4x8x1xf32> -> vector<4x8x1xf32>
    %39 = vector.broadcast %38 : vector<4x8x1xf32> to vector<4x8x8xf32>
    %40 = arith.mulf %35, %39 : vector<4x8x8xf32>
    %41 = arith.truncf %40 : vector<4x8x8xf32> to vector<4x8x8xbf16>
    %c0_25 = arith.constant 0 : index
    %c0_26 = arith.constant 0 : index
    %c0_27 = arith.constant 0 : index
    %42 = vector.load %arg20[%c0_25, %c0_26, %c0_27] : memref<4x8x8xbf16, #tpu.memory_space<vmem>>, vector<4x8x8xbf16>
    "tpu.trace_start"() <{level = 10 : i32, message = "hqk,hkd->hqd"}> : () -> ()
    %cst_28 = arith.constant dense<0.000000e+00> : vector<4x8x8xf32>
    %43 = tpu.matmul %41, %42, %cst_28 {dimension_numbers = #tpu.dot_dimension_numbers<[2], [1], [1], [2], [0, 0, 0, 1, 1, 2], [0], [0]>} : vector<4x8x8xbf16>, vector<4x8x8xbf16>, vector<4x8x8xf32> -> vector<4x8x8xf32>
    "tpu.trace_stop"() : () -> ()
    %44 = arith.truncf %43 : vector<4x8x8xf32> to vector<4x8x8xbf16>
    %45 = vector.extract_strided_slice %44 {offsets = [0, 0, 0], sizes = [1, 8, 8], strides = [1, 1, 1]} : vector<4x8x8xbf16> to vector<1x8x8xbf16>
    %46 = vector.shape_cast %45 : vector<1x8x8xbf16> to vector<8x8xbf16>
    %c0_29 = arith.constant 0 : index
    %c0_30 = arith.constant 0 : index
    %c0_31 = arith.constant 0 : index
    %47 = vector.load %arg8[%c0_29, %c0_30, %c0_31] : memref<4x8x32xbf16, #tpu.memory_space<vmem>>, vector<1x8x32xbf16>
    %48 = vector.shape_cast %47 : vector<1x8x32xbf16> to vector<8x32xbf16>
    %cst_32 = arith.constant dense<0.000000e+00> : vector<8x32xf32>
    %49 = tpu.matmul %46, %48, %cst_32 {dimension_numbers = #tpu.dot_dimension_numbers<[1], [0], [0], [1], [0, 0, 1, 1], [], []>} : vector<8x8xbf16>, vector<8x32xbf16>, vector<8x32xf32> -> vector<8x32xf32>
    %50 = vector.extract_strided_slice %44 {offsets = [1, 0, 0], sizes = [1, 8, 8], strides = [1, 1, 1]} : vector<4x8x8xbf16> to vector<1x8x8xbf16>
    %51 = vector.shape_cast %50 : vector<1x8x8xbf16> to vector<8x8xbf16>
    %c1_33 = arith.constant 1 : index
    %c0_34 = arith.constant 0 : index
    %c0_35 = arith.constant 0 : index
    %52 = vector.load %arg8[%c1_33, %c0_34, %c0_35] : memref<4x8x32xbf16, #tpu.memory_space<vmem>>, vector<1x8x32xbf16>
    %53 = vector.shape_cast %52 : vector<1x8x32xbf16> to vector<8x32xbf16>
    %cst_36 = arith.constant dense<0.000000e+00> : vector<8x32xf32>
    %54 = tpu.matmul %51, %53, %cst_36 {dimension_numbers = #tpu.dot_dimension_numbers<[1], [0], [0], [1], [0, 0, 1, 1], [], []>} : vector<8x8xbf16>, vector<8x32xbf16>, vector<8x32xf32> -> vector<8x32xf32>
    %55 = arith.addf %49, %54 : vector<8x32xf32>
    %56 = vector.extract_strided_slice %44 {offsets = [2, 0, 0], sizes = [1, 8, 8], strides = [1, 1, 1]} : vector<4x8x8xbf16> to vector<1x8x8xbf16>
    %57 = vector.shape_cast %56 : vector<1x8x8xbf16> to vector<8x8xbf16>
    %c2_37 = arith.constant 2 : index
    %c0_38 = arith.constant 0 : index
    %c0_39 = arith.constant 0 : index
    %58 = vector.load %arg8[%c2_37, %c0_38, %c0_39] : memref<4x8x32xbf16, #tpu.memory_space<vmem>>, vector<1x8x32xbf16>
    %59 = vector.shape_cast %58 : vector<1x8x32xbf16> to vector<8x32xbf16>
    %cst_40 = arith.constant dense<0.000000e+00> : vector<8x32xf32>
    %60 = tpu.matmul %57, %59, %cst_40 {dimension_numbers = #tpu.dot_dimension_numbers<[1], [0], [0], [1], [0, 0, 1, 1], [], []>} : vector<8x8xbf16>, vector<8x32xbf16>, vector<8x32xf32> -> vector<8x32xf32>
    %61 = arith.addf %55, %60 : vector<8x32xf32>
    %62 = vector.extract_strided_slice %44 {offsets = [3, 0, 0], sizes = [1, 8, 8], strides = [1, 1, 1]} : vector<4x8x8xbf16> to vector<1x8x8xbf16>
    %63 = vector.shape_cast %62 : vector<1x8x8xbf16> to vector<8x8xbf16>
    %c3_41 = arith.constant 3 : index
    %c0_42 = arith.constant 0 : index
    %c0_43 = arith.constant 0 : index
    %64 = vector.load %arg8[%c3_41, %c0_42, %c0_43] : memref<4x8x32xbf16, #tpu.memory_space<vmem>>, vector<1x8x32xbf16>
    %65 = vector.shape_cast %64 : vector<1x8x32xbf16> to vector<8x32xbf16>
    %cst_44 = arith.constant dense<0.000000e+00> : vector<8x32xf32>
    %66 = tpu.matmul %63, %65, %cst_44 {dimension_numbers = #tpu.dot_dimension_numbers<[1], [0], [0], [1], [0, 0, 1, 1], [], []>} : vector<8x8xbf16>, vector<8x32xbf16>, vector<8x32xf32> -> vector<8x32xf32>
    %67 = arith.addf %61, %66 : vector<8x32xf32>
    %c0_45 = arith.constant 0 : index
    %c0_46 = arith.constant 0 : index
    %68 = vector.load %arg9[%c0_45, %c0_46] : memref<1x32xf32, #tpu.memory_space<vmem>>, vector<1x32xf32>
    %69 = vector.broadcast %68 : vector<1x32xf32> to vector<8x32xf32>
    %70 = arith.addf %67, %69 : vector<8x32xf32>
    %71 = arith.addf %1, %70 : vector<8x32xf32>
    %c0_47 = arith.constant 0 : index
    %c0_48 = arith.constant 0 : index
    %72 = vector.load %arg10[%c0_47, %c0_48] : memref<1x32xf32, #tpu.memory_space<vmem>>, vector<1x32xf32>
    %c0_49 = arith.constant 0 : index
    %c0_50 = arith.constant 0 : index
    %73 = vector.load %arg11[%c0_49, %c0_50] : memref<1x32xf32, #tpu.memory_space<vmem>>, vector<1x32xf32>
    %cst_51 = arith.constant dense<0.000000e+00> : vector<8xf32>
    %74 = vector.multi_reduction <add>, %71, %cst_51 [1] : vector<8x32xf32> to vector<8xf32>
    %75 = vector.shape_cast %74 : vector<8xf32> to vector<8x1xf32>
    %cst_52 = arith.constant 3.200000e+01 : f32
    %76 = vector.broadcast %cst_52 : f32 to vector<8x1xf32>
    %77 = arith.divf %75, %76 : vector<8x1xf32>
    %78 = vector.broadcast %77 : vector<8x1xf32> to vector<8x32xf32>
    %79 = arith.subf %71, %78 : vector<8x32xf32>
    %80 = arith.mulf %79, %79 : vector<8x32xf32>
    %cst_53 = arith.constant dense<0.000000e+00> : vector<8xf32>
    %81 = vector.multi_reduction <add>, %80, %cst_53 [1] : vector<8x32xf32> to vector<8xf32>
    %82 = vector.shape_cast %81 : vector<8xf32> to vector<8x1xf32>
    %cst_54 = arith.constant 3.200000e+01 : f32
    %83 = vector.broadcast %cst_54 : f32 to vector<8x1xf32>
    %84 = arith.divf %82, %83 : vector<8x1xf32>
    %85 = vector.broadcast %77 : vector<8x1xf32> to vector<8x32xf32>
    %86 = arith.subf %71, %85 : vector<8x32xf32>
    %cst_55 = arith.constant 9.99999974E-6 : f32
    %87 = vector.broadcast %cst_55 : f32 to vector<8x1xf32>
    %88 = arith.addf %84, %87 : vector<8x1xf32>
    %89 = math.rsqrt %88 : vector<8x1xf32>
    %90 = vector.broadcast %89 : vector<8x1xf32> to vector<8x32xf32>
    %91 = arith.mulf %86, %90 : vector<8x32xf32>
    %92 = vector.broadcast %72 : vector<1x32xf32> to vector<8x32xf32>
    %93 = arith.mulf %91, %92 : vector<8x32xf32>
    %94 = vector.broadcast %73 : vector<1x32xf32> to vector<8x32xf32>
    %95 = arith.addf %93, %94 : vector<8x32xf32>
    %96 = arith.truncf %95 : vector<8x32xf32> to vector<8x32xbf16>
    %c0_56 = arith.constant 0 : index
    %c0_57 = arith.constant 0 : index
    %97 = vector.load %arg12[%c0_56, %c0_57] : memref<32x32xbf16, #tpu.memory_space<vmem>>, vector<32x32xbf16>
    %cst_58 = arith.constant dense<0.000000e+00> : vector<8x32xf32>
    %98 = tpu.matmul %96, %97, %cst_58 {dimension_numbers = #tpu.dot_dimension_numbers<[1], [0], [0], [1], [0, 0, 1, 1], [], []>} : vector<8x32xbf16>, vector<32x32xbf16>, vector<8x32xf32> -> vector<8x32xf32>
    %c0_59 = arith.constant 0 : index
    %c0_60 = arith.constant 0 : index
    %99 = vector.load %arg13[%c0_59, %c0_60] : memref<1x32xf32, #tpu.memory_space<vmem>>, vector<1x32xf32>
    %100 = vector.broadcast %99 : vector<1x32xf32> to vector<8x32xf32>
    %101 = arith.addf %98, %100 : vector<8x32xf32>
    %cst_61 = arith.constant 2.000000e+01 : f32
    %102 = vector.broadcast %cst_61 : f32 to vector<8x32xf32>
    %103 = arith.minimumf %101, %102 : vector<8x32xf32>
    %104 = math.exp %103 : vector<8x32xf32>
    %cst_62 = arith.constant 2.000000e+00 : f32
    %105 = vector.broadcast %cst_62 : f32 to vector<8x32xf32>
    %106 = arith.addf %104, %105 : vector<8x32xf32>
    %107 = arith.mulf %104, %106 : vector<8x32xf32>
    %cst_63 = arith.constant 2.000000e+00 : f32
    %108 = vector.broadcast %cst_63 : f32 to vector<8x32xf32>
    %109 = arith.addf %107, %108 : vector<8x32xf32>
    %110 = tpu.reciprocal %109 {approx = true} : vector<8x32xf32> -> vector<8x32xf32>
    %111 = arith.mulf %107, %110 : vector<8x32xf32>
    %cst_64 = arith.constant 2.000000e+01 : f32
    %112 = vector.broadcast %cst_64 : f32 to vector<8x32xf32>
    %113 = arith.cmpf ogt, %101, %112 : vector<8x32xf32>
    %114 = arith.mulf %101, %111 : vector<8x32xf32>
    %115 = arith.select %113, %101, %114 : vector<8x32xi1>, vector<8x32xf32>
    %116 = arith.truncf %115 : vector<8x32xf32> to vector<8x32xbf16>
    %c0_65 = arith.constant 0 : index
    %c0_66 = arith.constant 0 : index
    %117 = vector.load %arg14[%c0_65, %c0_66] : memref<32x32xbf16, #tpu.memory_space<vmem>>, vector<32x32xbf16>
    %cst_67 = arith.constant dense<0.000000e+00> : vector<8x32xf32>
    %118 = tpu.matmul %116, %117, %cst_67 {dimension_numbers = #tpu.dot_dimension_numbers<[1], [0], [0], [1], [0, 0, 1, 1], [], []>} : vector<8x32xbf16>, vector<32x32xbf16>, vector<8x32xf32> -> vector<8x32xf32>
    %c0_68 = arith.constant 0 : index
    %c0_69 = arith.constant 0 : index
    %119 = vector.load %arg15[%c0_68, %c0_69] : memref<1x32xf32, #tpu.memory_space<vmem>>, vector<1x32xf32>
    %120 = vector.broadcast %119 : vector<1x32xf32> to vector<8x32xf32>
    %121 = arith.addf %118, %120 : vector<8x32xf32>
    %122 = arith.addf %95, %121 : vector<8x32xf32>
    %c0_70 = arith.constant 0 : index
    %c0_71 = arith.constant 0 : index
    %123 = vector.load %arg16[%c0_70, %c0_71] : memref<1x32xf32, #tpu.memory_space<vmem>>, vector<1x32xf32>
    %c0_72 = arith.constant 0 : index
    %c0_73 = arith.constant 0 : index
    %124 = vector.load %arg17[%c0_72, %c0_73] : memref<1x32xf32, #tpu.memory_space<vmem>>, vector<1x32xf32>
    %cst_74 = arith.constant dense<0.000000e+00> : vector<8xf32>
    %125 = vector.multi_reduction <add>, %122, %cst_74 [1] : vector<8x32xf32> to vector<8xf32>
    %126 = vector.shape_cast %125 : vector<8xf32> to vector<8x1xf32>
    %cst_75 = arith.constant 3.200000e+01 : f32
    %127 = vector.broadcast %cst_75 : f32 to vector<8x1xf32>
    %128 = arith.divf %126, %127 : vector<8x1xf32>
    %129 = vector.broadcast %128 : vector<8x1xf32> to vector<8x32xf32>
    %130 = arith.subf %122, %129 : vector<8x32xf32>
    %131 = arith.mulf %130, %130 : vector<8x32xf32>
    %cst_76 = arith.constant dense<0.000000e+00> : vector<8xf32>
    %132 = vector.multi_reduction <add>, %131, %cst_76 [1] : vector<8x32xf32> to vector<8xf32>
    %133 = vector.shape_cast %132 : vector<8xf32> to vector<8x1xf32>
    %cst_77 = arith.constant 3.200000e+01 : f32
    %134 = vector.broadcast %cst_77 : f32 to vector<8x1xf32>
    %135 = arith.divf %133, %134 : vector<8x1xf32>
    %136 = vector.broadcast %128 : vector<8x1xf32> to vector<8x32xf32>
    %137 = arith.subf %122, %136 : vector<8x32xf32>
    %cst_78 = arith.constant 9.99999974E-6 : f32
    %138 = vector.broadcast %cst_78 : f32 to vector<8x1xf32>
    %139 = arith.addf %135, %138 : vector<8x1xf32>
    %140 = math.rsqrt %139 : vector<8x1xf32>
    %141 = vector.broadcast %140 : vector<8x1xf32> to vector<8x32xf32>
    %142 = arith.mulf %137, %141 : vector<8x32xf32>
    %143 = vector.broadcast %123 : vector<1x32xf32> to vector<8x32xf32>
    %144 = arith.mulf %142, %143 : vector<8x32xf32>
    %145 = vector.broadcast %124 : vector<1x32xf32> to vector<8x32xf32>
    %146 = arith.addf %144, %145 : vector<8x32xf32>
    %c0_79 = arith.constant 0 : index
    %c0_80 = arith.constant 0 : index
    %c0_81 = arith.constant 0 : index
    %147 = vector.load %arg18[%c0_79, %c0_80, %c0_81] : memref<1x8x32xf32, #tpu.memory_space<vmem>>, vector<1x8x32xf32>
    %148 = vector.shape_cast %147 : vector<1x8x32xf32> to vector<8x32xf32>
    %149 = vector.shape_cast %146 : vector<8x32xf32> to vector<1x8x32xf32>
    tpu.vector_store %arg18[%c0_79, %c0_80, %c0_81], %149 {strides = array<i32>} : memref<1x8x32xf32, #tpu.memory_space<vmem>>, vector<1x8x32xf32>,
    return
  }
  func.func @transform_0(%arg0: i32, %arg1: i32) -> (i32, i32, i32) {
    %c0_i32 = arith.constant 0 : i32
    %c0_i32_0 = arith.constant 0 : i32
    return %arg0, %arg1, %c0_i32 : i32, i32, i32
  }
  func.func @transform_1(%arg0: i32, %arg1: i32) -> (i32, i32, i32) {
    %c0_i32 = arith.constant 0 : i32
    %c0_i32_0 = arith.constant 0 : i32
    %c0_i32_1 = arith.constant 0 : i32
    return %arg0, %c0_i32, %c0_i32_0 : i32, i32, i32
  }
  func.func @transform_2(%arg0: i32, %arg1: i32) -> (i32, i32) {
    %c0_i32 = arith.constant 0 : i32
    %c0_i32_0 = arith.constant 0 : i32
    %c0_i32_1 = arith.constant 0 : i32
    return %c0_i32, %c0_i32_0 : i32, i32
  }
  func.func @transform_3(%arg0: i32, %arg1: i32) -> (i32, i32) {
    %c0_i32 = arith.constant 0 : i32
    %c0_i32_0 = arith.constant 0 : i32
    %c0_i32_1 = arith.constant 0 : i32
    return %c0_i32, %c0_i32_0 : i32, i32
  }
  func.func @transform_4(%arg0: i32, %arg1: i32) -> (i32, i32) {
    %c0_i32 = arith.constant 0 : i32
    %c0_i32_0 = arith.constant 0 : i32
    %c0_i32_1 = arith.constant 0 : i32
    return %c0_i32, %c0_i32_0 : i32, i32
  }
  func.func @transform_5(%arg0: i32, %arg1: i32) -> (i32, i32) {
    %c0_i32 = arith.constant 0 : i32
    %c0_i32_0 = arith.constant 0 : i32
    %c0_i32_1 = arith.constant 0 : i32
    return %c0_i32, %c0_i32_0 : i32, i32
  }
  func.func @transform_6(%arg0: i32, %arg1: i32) -> (i32, i32, i32) {
    %c0_i32 = arith.constant 0 : i32
    %c0_i32_0 = arith.constant 0 : i32
    %c0_i32_1 = arith.constant 0 : i32
    %c0_i32_2 = arith.constant 0 : i32
    return %c0_i32, %c0_i32_0, %c0_i32_1 : i32, i32, i32
  }
  func.func @transform_7(%arg0: i32, %arg1: i32) -> (i32, i32) {
    %c0_i32 = arith.constant 0 : i32
    %c0_i32_0 = arith.constant 0 : i32
    %c0_i32_1 = arith.constant 0 : i32
    return %c0_i32, %c0_i32_0 : i32, i32
  }
  func.func @transform_8(%arg0: i32, %arg1: i32) -> (i32, i32) {
    %c0_i32 = arith.constant 0 : i32
    %c0_i32_0 = arith.constant 0 : i32
    %c0_i32_1 = arith.constant 0 : i32
    return %c0_i32, %c0_i32_0 : i32, i32
  }
  func.func @transform_9(%arg0: i32, %arg1: i32) -> (i32, i32) {
    %c0_i32 = arith.constant 0 : i32
    %c0_i32_0 = arith.constant 0 : i32
    %c0_i32_1 = arith.constant 0 : i32
    return %c0_i32, %c0_i32_0 : i32, i32
  }
  func.func @transform_10(%arg0: i32, %arg1: i32) -> (i32, i32) {
    %c0_i32 = arith.constant 0 : i32
    %c0_i32_0 = arith.constant 0 : i32
    %c0_i32_1 = arith.constant 0 : i32
    return %c0_i32, %c0_i32_0 : i32, i32
  }
  func.func @transform_11(%arg0: i32, %arg1: i32) -> (i32, i32) {
    %c0_i32 = arith.constant 0 : i32
    %c0_i32_0 = arith.constant 0 : i32
    %c0_i32_1 = arith.constant 0 : i32
    return %c0_i32, %c0_i32_0 : i32, i32
  }
  func.func @transform_12(%arg0: i32, %arg1: i32) -> (i32, i32) {
    %c0_i32 = arith.constant 0 : i32
    %c0_i32_0 = arith.constant 0 : i32
    %c0_i32_1 = arith.constant 0 : i32
    return %c0_i32, %c0_i32_0 : i32, i32
  }
  func.func @transform_13(%arg0: i32, %arg1: i32) -> (i32, i32) {
    %c0_i32 = arith.constant 0 : i32
    %c0_i32_0 = arith.constant 0 : i32
    %c0_i32_1 = arith.constant 0 : i32
    return %c0_i32, %c0_i32_0 : i32, i32
  }
  func.func @transform_14(%arg0: i32, %arg1: i32) -> (i32, i32) {
    %c0_i32 = arith.constant 0 : i32
    %c0_i32_0 = arith.constant 0 : i32
    %c0_i32_1 = arith.constant 0 : i32
    return %c0_i32, %c0_i32_0 : i32, i32
  }
  func.func @transform_15(%arg0: i32, %arg1: i32) -> (i32, i32) {
    %c0_i32 = arith.constant 0 : i32
    %c0_i32_0 = arith.constant 0 : i32
    %c0_i32_1 = arith.constant 0 : i32
    return %c0_i32, %c0_i32_0 : i32, i32
  }
  func.func @transform_16(%arg0: i32, %arg1: i32) -> (i32, i32, i32) {
    %c0_i32 = arith.constant 0 : i32
    %c0_i32_0 = arith.constant 0 : i32
    return %arg0, %arg1, %c0_i32 : i32, i32, i32
  }
}

</mosaic_0001>

<llo_original>
// kernel: tpu_custom_call.1
$region0: #{tpu_custom_call.1}
  #allocation0 [shape = 'u32[]', space=smem, size = 0x4, offset = 0x4, fixed_abs, tag = 'smem constant byte address 0x4 - core index']
  #allocation1 [shape = 'u32[144,128]{1,0:T(1,128)}', space=vmem, size = 0x12000, scoped, tag = 'internal scratch']
  #allocation2 [shape = 'bf16[4,8,8]{2,1,0:T(8,128)(2,1)}', space=vmem, size = 0x2000, scoped, tag = 'scratch operand']
  #allocation3 [shape = 'bf16[4,8,8]{2,1,0:T(8,128)(2,1)}', space=vmem, size = 0x2000, scoped, tag = 'scratch operand']
  #allocation4 [shape = 'bf16[4,8,8]{2,1,0:T(8,128)(2,1)}', space=vmem, size = 0x2000, scoped, tag = 'scratch operand']
  %s0 = inlined_call_operand.hbm [shape: f32[2,8,32], index: 0, kind: input, shape index: {}]
  %s1 = inlined_call_operand.hbm [shape: bf16[2,8,32], index: 1, kind: input, shape index: {}]
  %s2 = inlined_call_operand.hbm [shape: bf16[32,32], index: 2, kind: input, shape index: {}]
  %s3 = inlined_call_operand.vmem [shape: f32[1,32], index: 3, kind: input, shape index: {}]
  %s4 = inlined_call_operand.hbm [shape: bf16[32,64], index: 4, kind: input, shape index: {}]
  %s5 = inlined_call_operand.vmem [shape: f32[1,64], index: 5, kind: input, shape index: {}]
  %s6 = inlined_call_operand.vmem [shape: bf16[4,8,32], index: 6, kind: input, shape index: {}]
  %s7 = inlined_call_operand.hbm [shape: f32[1,32], index: 7, kind: input, shape index: {}]
  %s8 = inlined_call_operand.hbm [shape: f32[1,32], index: 8, kind: input, shape index: {}]
  %s9 = inlined_call_operand.hbm [shape: f32[1,32], index: 9, kind: input, shape index: {}]
  %s10 = inlined_call_operand.vmem [shape: bf16[32,32], index: 10, kind: input, shape index: {}]
  %s11 = inlined_call_operand.vmem [shape: f32[1,32], index: 11, kind: input, shape index: {}]
  %s12 = inlined_call_operand.hbm [shape: bf16[32,32], index: 12, kind: input, shape index: {}]
  %s13 = inlined_call_operand.vmem [shape: f32[1,32], index: 13, kind: input, shape index: {}]
  %s14 = inlined_call_operand.vmem [shape: f32[1,32], index: 14, kind: input, shape index: {}]
  %s15 = inlined_call_operand.vmem [shape: f32[1,32], index: 15, kind: input, shape index: {}]
  %s16 = inlined_call_operand.hbm [shape: f32[2,8,32], index: 16, kind: output, shape index: {}]
  %s17 = sld [smem:[#allocation0]]
  $region133: #{tpu_custom_call.1} parent=0
    _
  %s19 = ssub.s32 1, %s17
  %s20 = scalar_select 0, %s19, %s17
  $region1: #{tpu_custom_call.1} parent=0
    #allocation5 [shape = 'u8[8192]{0}', space=vmem, size = 0x2000, scoped, tag = 'input window, operand 0']
    #allocation6 [shape = 's32[2]{0}', space=sflag, size = 0x8, scoped, tag = 'scoped memory for tpu_custom_call.1']
    #allocation7 [shape = 's32[2]{0}', space=sflag, size = 0x8, scoped, tag = 'scoped memory for tpu_custom_call.1']
    #allocation8 [shape = 'u8[4096]{0}', space=vmem, size = 0x1000, scoped, tag = 'input window, operand 1']
    #allocation9 [shape = 's32[2]{0}', space=sflag, size = 0x8, scoped, tag = 'scoped memory for tpu_custom_call.1']
    #allocation10 [shape = 'u8[8192]{0}', space=vmem, size = 0x2000, scoped, tag = 'input window, operand 2, single buffered']
    #allocation11 [shape = 'u8[8192]{0}', space=vmem, size = 0x2000, scoped, tag = 'input window, operand 4, single buffered']
    #allocation12 [shape = 's32[1]{0}', space=sflag, size = 0x4, scoped, tag = 'scoped memory for tpu_custom_call.1']
    #allocation13 [shape = 'u8[512]{0}', space=vmem, size = 0x400, scoped, tag = 'input window, operand 7, single buffered']
    #allocation14 [shape = 'u8[512]{0}', space=vmem, size = 0x400, scoped, tag = 'input window, operand 8, single buffered']
    #allocation15 [shape = 's32[1]{0}', space=sflag, size = 0x4, scoped, tag = 'scoped memory for tpu_custom_call.1']
    #allocation16 [shape = 'u8[512]{0}', space=vmem, size = 0x400, scoped, tag = 'input window, operand 9, single buffered']
    #allocation17 [shape = 'u8[8192]{0}', space=vmem, size = 0x2000, scoped, tag = 'input window, operand 12, single buffered']
    #allocation18 [shape = 's32[1]{0}', space=sflag, size = 0x4, scoped, tag = 'scoped memory for tpu_custom_call.1']
    #allocation19 [shape = 'u8[8192]{0}', space=vmem, size = 0x2000, scoped, tag = 'output window, operand 0']
    %21 = vsyncpa [#allocation6], 0
    %s22 = scalar_lea.sflag [#allocation6], 1
    %23 = vsyncpa %s22, 0
    %24 = vsyncpa [#allocation9], 0
    %s25 = scalar_lea.sflag [#allocation9], 1
    %26 = vsyncpa %s25, 0
    %27 = vsyncpa [#allocation12], 0
    %28 = vsyncpa [#allocation15], 0
    %29 = vsyncpa [#allocation18], 0
    %30 = vsyncpa [#allocation7], 0
    %s31 = scalar_lea.sflag [#allocation7], 1
    %32 = vsyncpa %s31, 0
    loop: start=0, step=1, limit=4
    $region2: #{tpu_custom_call.1} parent=1 // loop_pre_header
      _
    $region3: #{tpu_custom_call.1} parent=1 // loop_header
      %s34 = sphi 0, %s38
      %p35 = scmp.ge.s32.totalorder %s34, 4
      %s41 = sphi 0, %s53
      %s42 = sphi 0, %s49
      %s43 = sphi 0, %s41
      %s44 = sphi 0, %s42
      %s45 = sphi 0, %s43
      %s46 = sphi 0, %s44
      %s58 = sphi 0, %s60
      %s61 = sphi 0, %s58
      %s62 = sphi 0, %s61
      %s78 = sphi 0, %s62
      %s84 = sphi 0, %s86
      %s87 = sphi 0, %s84
      %s88 = sphi 0, %s87
      %s104 = sphi 0, %s88
      %s108 = sphi 0, %s108
      %s110 = sphi 0, %s108
      %s111 = sphi 0, %s110
      %s125 = sphi 0, %s111
      %s129 = sphi 0, %s129
      %s131 = sphi 0, %s129
      %s132 = sphi 0, %s131
      %s146 = sphi 0, %s132
      %s150 = sphi 0, %s150
      %s152 = sphi 0, %s150
      %s153 = sphi 0, %s152
      %s167 = sphi 0, %s153
      %s171 = sphi 0, %s171
      %s173 = sphi 0, %s171
      %s174 = sphi 0, %s173
      %s188 = sphi 0, %s174
      %s192 = sphi 0, %s192
      %s194 = sphi 0, %s192
      %s195 = sphi 0, %s194
      %s209 = sphi 0, %s195
      %s213 = sphi 0, %s213
      %s215 = sphi 0, %s213
      %s216 = sphi 0, %s215
      %s230 = sphi 0, %s216
      %s234 = sphi 0, %s234
      %s236 = sphi 0, %s234
      %s237 = sphi 0, %s236
      %s251 = sphi 0, %s237
      %s255 = sphi 0, %s255
      %s257 = sphi 0, %s255
      %s258 = sphi 0, %s257
      %s272 = sphi 0, %s258
      %s276 = sphi 0, %s276
      %s278 = sphi 0, %s276
      %s279 = sphi 0, %s278
      %s293 = sphi 0, %s279
      %s297 = sphi 0, %s297
      %s299 = sphi 0, %s297
      %s300 = sphi 0, %s299
      %s314 = sphi 0, %s300
      %s318 = sphi 0, %s318
      %s320 = sphi 0, %s318
      %s321 = sphi 0, %s320
      %s335 = sphi 0, %s321
      %s339 = sphi 0, %s339
      %s341 = sphi 0, %s339
      %s342 = sphi 0, %s341
      %s356 = sphi 0, %s342
      %s360 = sphi 0, %s360
      %s362 = sphi 0, %s360
      %s363 = sphi 0, %s362
      %s377 = sphi 0, %s363
      %s381 = sphi 0, %s381
      %s383 = sphi 0, %s381
      %s384 = sphi 0, %s383
      %s398 = sphi 0, %s384
      %s406 = sphi 0, %s408
      %s409 = sphi 0, %s406
      %s410 = sphi 0, %s409
      %s426 = sphi 0, %s410
    $region4: #{tpu_custom_call.1} parent=1 // loop_header_branch
      %37 = sbr.rel (%p35) target = $region8
    $region5: #{tpu_custom_call.1} parent=1 // loop_body
      %s39 = ssub.s32 %s34, 1
      %s40 = ssub.s32 %s34, 2
      %s47 = sadd.s32 1, %s42
      %p48 = scmp.ge.s32.totalorder %s47, 1
      %s49 = scalar_select %p48, 0, %s47
      %s50 = sadd.s32 1, %s41
      %s51 = scalar_select %p48, %s50, %s41
      %p52 = scmp.ge.s32.totalorder %s51, 2
      %s53 = scalar_select %p52, 0, %s51
      %s54 = ssub.s32 %s41, %s53
      %s55 = ssub.s32 %s42, %s49
      %s56 = sor.u32 %s54, %s55
      %p57 = scmp.eq.s32.totalorder %s56, 0
      %s59 = sadd.s32 %s58, 1
      %s60 = scalar_select %p57, %s58, %s59
      %p63 = pneg %p57
      %p64 = scmp.eq.s32.totalorder %s34, 1
      %p65 = por %p63, %p64
      %p66 = scmp.ne.s32.totalorder %s58, %s61
      %p67 = scmp.eq.s32.totalorder %s34, 0
      %p68 = por %p66, %p67
      %p69 = scmp.ne.s32.totalorder %s58, %s61
      %p70 = scmp.eq.s32.totalorder %s39, 1
      %p71 = por %p69, %p70
      %p72 = scmp.ne.s32.totalorder %s61, %s62
      %p73 = scmp.eq.s32.totalorder %s39, 0
      %p74 = por %p72, %p73
      %p75 = scmp.ne.s32.totalorder %s61, %s62
      %p76 = scmp.eq.s32.totalorder %s40, 1
      %p77 = por %p75, %p76
      %p79 = scmp.ne.s32.totalorder %s62, %s78
      %p80 = scmp.eq.s32.totalorder %s40, 0
      %p81 = por %p79, %p80
      %s82 = ssub.s32 %s41, %s53
      %p83 = scmp.eq.s32.totalorder %s82, 0
      %s85 = sadd.s32 %s84, 1
      %s86 = scalar_select %p83, %s84, %s85
      %p89 = pneg %p83
      %p90 = scmp.eq.s32.totalorder %s34, 1
      %p91 = por %p89, %p90
      %p92 = scmp.ne.s32.totalorder %s84, %s87
      %p93 = scmp.eq.s32.totalorder %s34, 0
      %p94 = por %p92, %p93
      %p95 = scmp.ne.s32.totalorder %s84, %s87
      %p96 = scmp.eq.s32.totalorder %s39, 1
      %p97 = por %p95, %p96
      %p98 = scmp.ne.s32.totalorder %s87, %s88
      %p99 = scmp.eq.s32.totalorder %s39, 0
      %p100 = por %p98, %p99
      %p101 = scmp.ne.s32.totalorder %s87, %s88
      %p102 = scmp.eq.s32.totalorder %s40, 1
      %p103 = por %p101, %p102
      %p105 = scmp.ne.s32.totalorder %s88, %s104
      %p106 = scmp.eq.s32.totalorder %s40, 0
      %p107 = por %p105, %p106
      %s109 = sadd.s32 %s108, 1
      %p112 = scmp.eq.s32.totalorder %s34, 1
      %p113 = scmp.ne.s32.totalorder %s108, %s110
      %p114 = scmp.eq.s32.totalorder %s34, 0
      %p115 = por %p113, %p114
      %p116 = scmp.ne.s32.totalorder %s108, %s110
      %p117 = scmp.eq.s32.totalorder %s39, 1
      %p118 = por %p116, %p117
      %p119 = scmp.ne.s32.totalorder %s110, %s111
      %p120 = scmp.eq.s32.totalorder %s39, 0
      %p121 = por %p119, %p120
      %p122 = scmp.ne.s32.totalorder %s110, %s111
      %p123 = scmp.eq.s32.totalorder %s40, 1
      %p124 = por %p122, %p123
      %p126 = scmp.ne.s32.totalorder %s111, %s125
      %p127 = scmp.eq.s32.totalorder %s40, 0
      %p128 = por %p126, %p127
      %s130 = sadd.s32 %s129, 1
      %p133 = scmp.eq.s32.totalorder %s34, 1
      %p134 = scmp.ne.s32.totalorder %s129, %s131
      %p135 = scmp.eq.s32.totalorder %s34, 0
      %p136 = por %p134, %p135
      %p137 = scmp.ne.s32.totalorder %s129, %s131
      %p138 = scmp.eq.s32.totalorder %s39, 1
      %p139 = por %p137, %p138
      %p140 = scmp.ne.s32.totalorder %s131, %s132
      %p141 = scmp.eq.s32.totalorder %s39, 0
      %p142 = por %p140, %p141
      %p143 = scmp.ne.s32.totalorder %s131, %s132
      %p144 = scmp.eq.s32.totalorder %s40, 1
      %p145 = por %p143, %p144
      %p147 = scmp.ne.s32.totalorder %s132, %s146
      %p148 = scmp.eq.s32.totalorder %s40, 0
      %p149 = por %p147, %p148
      %s151 = sadd.s32 %s150, 1
      %p154 = scmp.eq.s32.totalorder %s34, 1
      %p155 = scmp.ne.s32.totalorder %s150, %s152
      %p156 = scmp.eq.s32.totalorder %s34, 0
      %p157 = por %p155, %p156
      %p158 = scmp.ne.s32.totalorder %s150, %s152
      %p159 = scmp.eq.s32.totalorder %s39, 1
      %p160 = por %p158, %p159
      %p161 = scmp.ne.s32.totalorder %s152, %s153
      %p162 = scmp.eq.s32.totalorder %s39, 0
      %p163 = por %p161, %p162
      %p164 = scmp.ne.s32.totalorder %s152, %s153
      %p165 = scmp.eq.s32.totalorder %s40, 1
      %p166 = por %p164, %p165
      %p168 = scmp.ne.s32.totalorder %s153, %s167
      %p169 = scmp.eq.s32.totalorder %s40, 0
      %p170 = por %p168, %p169
      %s172 = sadd.s32 %s171, 1
      %p175 = scmp.eq.s32.totalorder %s34, 1
      %p176 = scmp.ne.s32.totalorder %s171, %s173
      %p177 = scmp.eq.s32.totalorder %s34, 0
      %p178 = por %p176, %p177
      %p179 = scmp.ne.s32.totalorder %s171, %s173
      %p180 = scmp.eq.s32.totalorder %s39, 1
      %p181 = por %p179, %p180
      %p182 = scmp.ne.s32.totalorder %s173, %s174
      %p183 = scmp.eq.s32.totalorder %s39, 0
      %p184 = por %p182, %p183
      %p185 = scmp.ne.s32.totalorder %s173, %s174
      %p186 = scmp.eq.s32.totalorder %s40, 1
      %p187 = por %p185, %p186
      %p189 = scmp.ne.s32.totalorder %s174, %s188
      %p190 = scmp.eq.s32.totalorder %s40, 0
      %p191 = por %p189, %p190
      %s193 = sadd.s32 %s192, 1
      %p196 = scmp.eq.s32.totalorder %s34, 1
      %p197 = scmp.ne.s32.totalorder %s192, %s194
      %p198 = scmp.eq.s32.totalorder %s34, 0
      %p199 = por %p197, %p198
      %p200 = scmp.ne.s32.totalorder %s192, %s194
      %p201 = scmp.eq.s32.totalorder %s39, 1
      %p202 = por %p200, %p201
      %p203 = scmp.ne.s32.totalorder %s194, %s195
      %p204 = scmp.eq.s32.totalorder %s39, 0
      %p205 = por %p203, %p204
      %p206 = scmp.ne.s32.totalorder %s194, %s195
      %p207 = scmp.eq.s32.totalorder %s40, 1
      %p208 = por %p206, %p207
      %p210 = scmp.ne.s32.totalorder %s195, %s209
      %p211 = scmp.eq.s32.totalorder %s40, 0
      %p212 = por %p210, %p211
      %s214 = sadd.s32 %s213, 1
      %p217 = scmp.eq.s32.totalorder %s34, 1
      %p218 = scmp.ne.s32.totalorder %s213, %s215
      %p219 = scmp.eq.s32.totalorder %s34, 0
      %p220 = por %p218, %p219
      %p221 = scmp.ne.s32.totalorder %s213, %s215
      %p222 = scmp.eq.s32.totalorder %s39, 1
      %p223 = por %p221, %p222
      %p224 = scmp.ne.s32.totalorder %s215, %s216
      %p225 = scmp.eq.s32.totalorder %s39, 0
      %p226 = por %p224, %p225
      %p227 = scmp.ne.s32.totalorder %s215, %s216
      %p228 = scmp.eq.s32.totalorder %s40, 1
      %p229 = por %p227, %p228
      %p231 = scmp.ne.s32.totalorder %s216, %s230
      %p232 = scmp.eq.s32.totalorder %s40, 0
      %p233 = por %p231, %p232
      %s235 = sadd.s32 %s234, 1
      %p238 = scmp.eq.s32.totalorder %s34, 1
      %p239 = scmp.ne.s32.totalorder %s234, %s236
      %p240 = scmp.eq.s32.totalorder %s34, 0
      %p241 = por %p239, %p240
      %p242 = scmp.ne.s32.totalorder %s234, %s236
      %p243 = scmp.eq.s32.totalorder %s39, 1
      %p244 = por %p242, %p243
      %p245 = scmp.ne.s32.totalorder %s236, %s237
      %p246 = scmp.eq.s32.totalorder %s39, 0
      %p247 = por %p245, %p246
      %p248 = scmp.ne.s32.totalorder %s236, %s237
      %p249 = scmp.eq.s32.totalorder %s40, 1
      %p250 = por %p248, %p249
      %p252 = scmp.ne.s32.totalorder %s237, %s251
      %p253 = scmp.eq.s32.totalorder %s40, 0
      %p254 = por %p252, %p253
      %s256 = sadd.s32 %s255, 1
      %p259 = scmp.eq.s32.totalorder %s34, 1
      %p260 = scmp.ne.s32.totalorder %s255, %s257
      %p261 = scmp.eq.s32.totalorder %s34, 0
      %p262 = por %p260, %p261
      %p263 = scmp.ne.s32.totalorder %s255, %s257
      %p264 = scmp.eq.s32.totalorder %s39, 1
      %p265 = por %p263, %p264
      %p266 = scmp.ne.s32.totalorder %s257, %s258
      %p267 = scmp.eq.s32.totalorder %s39, 0
      %p268 = por %p266, %p267
      %p269 = scmp.ne.s32.totalorder %s257, %s258
      %p270 = scmp.eq.s32.totalorder %s40, 1
      %p271 = por %p269, %p270
      %p273 = scmp.ne.s32.totalorder %s258, %s272
      %p274 = scmp.eq.s32.totalorder %s40, 0
      %p275 = por %p273, %p274
      %s277 = sadd.s32 %s276, 1
      %p280 = scmp.eq.s32.totalorder %s34, 1
      %p281 = scmp.ne.s32.totalorder %s276, %s278
      %p282 = scmp.eq.s32.totalorder %s34, 0
      %p283 = por %p281, %p282
      %p284 = scmp.ne.s32.totalorder %s276, %s278
      %p285 = scmp.eq.s32.totalorder %s39, 1
      %p286 = por %p284, %p285
      %p287 = scmp.ne.s32.totalorder %s278, %s279
      %p288 = scmp.eq.s32.totalorder %s39, 0
      %p289 = por %p287, %p288
      %p290 = scmp.ne.s32.totalorder %s278, %s279
      %p291 = scmp.eq.s32.totalorder %s40, 1
      %p292 = por %p290, %p291
      %p294 = scmp.ne.s32.totalorder %s279, %s293
      %p295 = scmp.eq.s32.totalorder %s40, 0
      %p296 = por %p294, %p295
      %s298 = sadd.s32 %s297, 1
      %p301 = scmp.eq.s32.totalorder %s34, 1
      %p302 = scmp.ne.s32.totalorder %s297, %s299
      %p303 = scmp.eq.s32.totalorder %s34, 0
      %p304 = por %p302, %p303
      %p305 = scmp.ne.s32.totalorder %s297, %s299
      %p306 = scmp.eq.s32.totalorder %s39, 1
      %p307 = por %p305, %p306
      %p308 = scmp.ne.s32.totalorder %s299, %s300
      %p309 = scmp.eq.s32.totalorder %s39, 0
      %p310 = por %p308, %p309
      %p311 = scmp.ne.s32.totalorder %s299, %s300
      %p312 = scmp.eq.s32.totalorder %s40, 1
      %p313 = por %p311, %p312
      %p315 = scmp.ne.s32.totalorder %s300, %s314
      %p316 = scmp.eq.s32.totalorder %s40, 0
      %p317 = por %p315, %p316
      %s319 = sadd.s32 %s318, 1
      %p322 = scmp.eq.s32.totalorder %s34, 1
      %p323 = scmp.ne.s32.totalorder %s318, %s320
      %p324 = scmp.eq.s32.totalorder %s34, 0
      %p325 = por %p323, %p324
      %p326 = scmp.ne.s32.totalorder %s318, %s320
      %p327 = scmp.eq.s32.totalorder %s39, 1
      %p328 = por %p326, %p327
      %p329 = scmp.ne.s32.totalorder %s320, %s321
      %p330 = scmp.eq.s32.totalorder %s39, 0
      %p331 = por %p329, %p330
      %p332 = scmp.ne.s32.totalorder %s320, %s321
      %p333 = scmp.eq.s32.totalorder %s40, 1
      %p334 = por %p332, %p333
      %p336 = scmp.ne.s32.totalorder %s321, %s335
      %p337 = scmp.eq.s32.totalorder %s40, 0
      %p338 = por %p336, %p337
      %s340 = sadd.s32 %s339, 1
      %p343 = scmp.eq.s32.totalorder %s34, 1
      %p344 = scmp.ne.s32.totalorder %s339, %s341
      %p345 = scmp.eq.s32.totalorder %s34, 0
      %p346 = por %p344, %p345
      %p347 = scmp.ne.s32.totalorder %s339, %s341
      %p348 = scmp.eq.s32.totalorder %s39, 1
      %p349 = por %p347, %p348
      %p350 = scmp.ne.s32.totalorder %s341, %s342
      %p351 = scmp.eq.s32.totalorder %s39, 0
      %p352 = por %p350, %p351
      %p353 = scmp.ne.s32.totalorder %s341, %s342
      %p354 = scmp.eq.s32.totalorder %s40, 1
      %p355 = por %p353, %p354
      %p357 = scmp.ne.s32.totalorder %s342, %s356
      %p358 = scmp.eq.s32.totalorder %s40, 0
      %p359 = por %p357, %p358
      %s361 = sadd.s32 %s360, 1
      %p364 = scmp.eq.s32.totalorder %s34, 1
      %p365 = scmp.ne.s32.totalorder %s360, %s362
      %p366 = scmp.eq.s32.totalorder %s34, 0
      %p367 = por %p365, %p366
      %p368 = scmp.ne.s32.totalorder %s360, %s362
      %p369 = scmp.eq.s32.totalorder %s39, 1
      %p370 = por %p368, %p369
      %p371 = scmp.ne.s32.totalorder %s362, %s363
      %p372 = scmp.eq.s32.totalorder %s39, 0
      %p373 = por %p371, %p372
      %p374 = scmp.ne.s32.totalorder %s362, %s363
      %p375 = scmp.eq.s32.totalorder %s40, 1
      %p376 = por %p374, %p375
      %p378 = scmp.ne.s32.totalorder %s363, %s377
      %p379 = scmp.eq.s32.totalorder %s40, 0
      %p380 = por %p378, %p379
      %s382 = sadd.s32 %s381, 1
      %p385 = scmp.eq.s32.totalorder %s34, 1
      %p386 = scmp.ne.s32.totalorder %s381, %s383
      %p387 = scmp.eq.s32.totalorder %s34, 0
      %p388 = por %p386, %p387
      %p389 = scmp.ne.s32.totalorder %s381, %s383
      %p390 = scmp.eq.s32.totalorder %s39, 1
      %p391 = por %p389, %p390
      %p392 = scmp.ne.s32.totalorder %s383, %s384
      %p393 = scmp.eq.s32.totalorder %s39, 0
      %p394 = por %p392, %p393
      %p395 = scmp.ne.s32.totalorder %s383, %s384
      %p396 = scmp.eq.s32.totalorder %s40, 1
      %p397 = por %p395, %p396
      %p399 = scmp.ne.s32.totalorder %s384, %s398
      %p400 = scmp.eq.s32.totalorder %s40, 0
      %p401 = por %p399, %p400
      %s402 = ssub.s32 %s41, %s53
      %s403 = ssub.s32 %s42, %s49
      %s404 = sor.u32 %s402, %s403
      %p405 = scmp.eq.s32.totalorder %s404, 0
      %s407 = sadd.s32 %s406, 1
      %s408 = scalar_select %p405, %s406, %s407
      %p411 = pneg %p405
      %p412 = scmp.eq.s32.totalorder %s34, 1
      %p413 = por %p411, %p412
      %p414 = scmp.ne.s32.totalorder %s406, %s409
      %p415 = scmp.eq.s32.totalorder %s34, 0
      %p416 = por %p414, %p415
      %p417 = scmp.ne.s32.totalorder %s406, %s409
      %p418 = scmp.eq.s32.totalorder %s39, 1
      %p419 = por %p417, %p418
      %p420 = scmp.ne.s32.totalorder %s409, %s410
      %p421 = scmp.eq.s32.totalorder %s39, 0
      %p422 = por %p420, %p421
      %p423 = scmp.ne.s32.totalorder %s409, %s410
      %p424 = scmp.eq.s32.totalorder %s40, 1
      %p425 = por %p423, %p424
      %p427 = scmp.ne.s32.totalorder %s410, %s426
      %p428 = scmp.eq.s32.totalorder %s40, 0
      %p429 = por %p427, %p428
      %p430 = scmp.le.s32.totalorder 1, %s34
      %p431 = scmp.lt.s32.totalorder %s34, 3
      %p432 = pnand %p430, %p431
      %p433 = pneg %p432
      // Predicated region
      $region9: #{tpu_custom_call.1} parent=5 // pred_check
        _
      $region10: #{tpu_custom_call.1} parent=5 // pred_check_branch
        %435 = sbr.rel (%p432) target = $region12
      $region11: #{tpu_custom_call.1} parent=5 // pred_region
        %s436 = ssub.s32 %s34, 1
        // Predicated region
        $region13: #{tpu_custom_call.1} parent=11 // pred_check
          %p437 = pneg %p121
        $region14: #{tpu_custom_call.1} parent=11 // pred_check_branch
          %439 = sbr.rel (%p437) target = $region16
        $region15: #{tpu_custom_call.1} parent=11 // pred_region
          %s441 = ssub.s32 256, 256
          %442 = vsyncadd [#allocation9], %s441
          %s443 = sshll.u32 [#allocation10], 4
          %s444 = int_to_ptr.vmem [resolvable:$true] %s443
          %449 = dma.hbm_to_vmem [thread:$0]  %s2, 256, %s444, [#allocation9], 64, 64, 4
        $region16: #{tpu_custom_call.1} parent=11 // pred_fallthru
          _
        // Predicated region
        $region17: #{tpu_custom_call.1} parent=11 // pred_check
          %p450 = pneg %p142
        $region18: #{tpu_custom_call.1} parent=11 // pred_check_branch
          %452 = sbr.rel (%p450) target = $region20
        $region19: #{tpu_custom_call.1} parent=11 // pred_region
          _
        $region20: #{tpu_custom_call.1} parent=11 // pred_fallthru
          _
        // Predicated region
        $region21: #{tpu_custom_call.1} parent=11 // pred_check
          %p453 = pneg %p163
        $region22: #{tpu_custom_call.1} parent=11 // pred_check_branch
          %455 = sbr.rel (%p453) target = $region24
        $region23: #{tpu_custom_call.1} parent=11 // pred_region
          %s457 = ssub.s32 256, 256
          %458 = vsyncadd [#allocation12], %s457
          %s459 = sshll.u32 [#allocation11], 4
          %s460 = int_to_ptr.vmem [resolvable:$true] %s459
          %465 = dma.hbm_to_vmem [thread:$0]  %s4, 256, %s460, [#allocation12], 64, 64, 4
        $region24: #{tpu_custom_call.1} parent=11 // pred_fallthru
          _
        // Predicated region
        $region25: #{tpu_custom_call.1} parent=11 // pred_check
          %p466 = pneg %p184
        $region26: #{tpu_custom_call.1} parent=11 // pred_check_branch
          %468 = sbr.rel (%p466) target = $region28
        $region27: #{tpu_custom_call.1} parent=11 // pred_region
          _
        $region28: #{tpu_custom_call.1} parent=11 // pred_fallthru
          _
        // Predicated region
        $region29: #{tpu_custom_call.1} parent=11 // pred_check
          %p469 = pneg %p205
        $region30: #{tpu_custom_call.1} parent=11 // pred_check_branch
          %471 = sbr.rel (%p469) target = $region32
        $region31: #{tpu_custom_call.1} parent=11 // pred_region
          _
        $region32: #{tpu_custom_call.1} parent=11 // pred_fallthru
          _
        // Predicated region
        $region33: #{tpu_custom_call.1} parent=11 // pred_check
          %p472 = pneg %p226
        $region34: #{tpu_custom_call.1} parent=11 // pred_check_branch
          %474 = sbr.rel (%p472) target = $region36
        $region35: #{tpu_custom_call.1} parent=11 // pred_region
          %s476 = ssub.s32 16, 16
          %477 = vsyncadd [#allocation12], %s476
          %s479 = sshll.u32 [#allocation13], 4
          %s480 = int_to_ptr.vmem [resolvable:$true] %s479
          %482 = dma.hbm_to_vmem [thread:$0]  %s7, 16, %s480, [#allocation12]
        $region36: #{tpu_custom_call.1} parent=11 // pred_fallthru
          _
        // Predicated region
        $region37: #{tpu_custom_call.1} parent=11 // pred_check
          %p483 = pneg %p247
        $region38: #{tpu_custom_call.1} parent=11 // pred_check_branch
          %485 = sbr.rel (%p483) target = $region40
        $region39: #{tpu_custom_call.1} parent=11 // pred_region
          %s487 = ssub.s32 16, 16
          %488 = vsyncadd [#allocation15], %s487
          %s490 = sshll.u32 [#allocation14], 4
          %s491 = int_to_ptr.vmem [resolvable:$true] %s490
          %493 = dma.hbm_to_vmem [thread:$0]  %s8, 16, %s491, [#allocation15]
        $region40: #{tpu_custom_call.1} parent=11 // pred_fallthru
          _
        // Predicated region
        $region41: #{tpu_custom_call.1} parent=11 // pred_check
          %p494 = pneg %p268
        $region42: #{tpu_custom_call.1} parent=11 // pred_check_branch
          %496 = sbr.rel (%p494) target = $region44
        $region43: #{tpu_custom_call.1} parent=11 // pred_region
          %s498 = ssub.s32 16, 16
          %499 = vsyncadd [#allocation15], %s498
          %s501 = sshll.u32 [#allocation16], 4
          %s502 = int_to_ptr.vmem [resolvable:$true] %s501
          %504 = dma.hbm_to_vmem [thread:$0]  %s9, 16, %s502, [#allocation15]
        $region44: #{tpu_custom_call.1} parent=11 // pred_fallthru
          _
        // Predicated region
        $region45: #{tpu_custom_call.1} parent=11 // pred_check
          %p505 = pneg %p289
        $region46: #{tpu_custom_call.1} parent=11 // pred_check_branch
          %507 = sbr.rel (%p505) target = $region48
        $region47: #{tpu_custom_call.1} parent=11 // pred_region
          _
        $region48: #{tpu_custom_call.1} parent=11 // pred_fallthru
          _
        // Predicated region
        $region49: #{tpu_custom_call.1} parent=11 // pred_check
          %p508 = pneg %p310
        $region50: #{tpu_custom_call.1} parent=11 // pred_check_branch
          %510 = sbr.rel (%p508) target = $region52
        $region51: #{tpu_custom_call.1} parent=11 // pred_region
          _
        $region52: #{tpu_custom_call.1} parent=11 // pred_fallthru
          _
        // Predicated region
        $region53: #{tpu_custom_call.1} parent=11 // pred_check
          %p511 = pneg %p331
        $region54: #{tpu_custom_call.1} parent=11 // pred_check_branch
          %513 = sbr.rel (%p511) target = $region56
        $region55: #{tpu_custom_call.1} parent=11 // pred_region
          %s515 = ssub.s32 256, 256
          %516 = vsyncadd [#allocation18], %s515
          %s517 = sshll.u32 [#allocation17], 4
          %s518 = int_to_ptr.vmem [resolvable:$true] %s517
          %523 = dma.hbm_to_vmem [thread:$0]  %s12, 256, %s518, [#allocation18], 64, 64, 4
        $region56: #{tpu_custom_call.1} parent=11 // pred_fallthru
          _
        // Predicated region
        $region57: #{tpu_custom_call.1} parent=11 // pred_check
          %p524 = pneg %p352
        $region58: #{tpu_custom_call.1} parent=11 // pred_check_branch
          %526 = sbr.rel (%p524) target = $region60
        $region59: #{tpu_custom_call.1} parent=11 // pred_region
          _
        $region60: #{tpu_custom_call.1} parent=11 // pred_fallthru
          _
        // Predicated region
        $region61: #{tpu_custom_call.1} parent=11 // pred_check
          %p527 = pneg %p373
        $region62: #{tpu_custom_call.1} parent=11 // pred_check_branch
          %529 = sbr.rel (%p527) target = $region64
        $region63: #{tpu_custom_call.1} parent=11 // pred_region
          _
        $region64: #{tpu_custom_call.1} parent=11 // pred_fallthru
          _
        // Predicated region
        $region65: #{tpu_custom_call.1} parent=11 // pred_check
          %p530 = pneg %p394
        $region66: #{tpu_custom_call.1} parent=11 // pred_check_branch
          %532 = sbr.rel (%p530) target = $region68
        $region67: #{tpu_custom_call.1} parent=11 // pred_region
          _
        $region68: #{tpu_custom_call.1} parent=11 // pred_fallthru
          _
      $region12: #{tpu_custom_call.1} parent=5 // pred_fallthru
        _
      %p533 = scmp.lt.s32.totalorder %s34, 2
      // Predicated region
      $region69: #{tpu_custom_call.1} parent=5 // pred_check
        %p534 = pneg %p533
      $region70: #{tpu_custom_call.1} parent=5 // pred_check_branch
        %536 = sbr.rel (%p534) target = $region72
      $region71: #{tpu_custom_call.1} parent=5 // pred_region
        // Predicated region
        $region73: #{tpu_custom_call.1} parent=71 // pred_check
          %p537 = pneg %p68
        $region74: #{tpu_custom_call.1} parent=71 // pred_check_branch
          %539 = sbr.rel (%p537) target = $region76
        $region75: #{tpu_custom_call.1} parent=71 // pred_region
          %s540 = sand.u32 %s58, 1
          %s541 = scalar_lea.sflag [#allocation6], %s540
          %s542 = sand.u32 %s58, 1
          %s543 = smul.addr %s542, 8
          %s544 = scalar_lea.vmem [#allocation5], %s543
          %s546 = ssub.s32 128, 128
          %547 = vsyncadd %s541, %s546
          %s548 = sadd.s32 %s42, %s41
          %s549 = smul.addr %s548, 128
          %s550 = scalar_lea.hbm %s0, %s549
          %s552 = sshll.u32 %s544, 4
          %s553 = int_to_ptr.vmem [resolvable:$true] %s552
          %555 = dma.hbm_to_vmem [thread:$0]  %s550, 128, %s553, %s541
        $region76: #{tpu_custom_call.1} parent=71 // pred_fallthru
          _
        // Predicated region
        $region77: #{tpu_custom_call.1} parent=71 // pred_check
          %p556 = pneg %p94
        $region78: #{tpu_custom_call.1} parent=71 // pred_check_branch
          %558 = sbr.rel (%p556) target = $region80
        $region79: #{tpu_custom_call.1} parent=71 // pred_region
          %s559 = sand.u32 %s34, 1
          %s560 = scalar_lea.sflag [#allocation9], %s559
          %s561 = sand.u32 %s84, 1
          %s562 = smul.addr %s561, 4
          %s563 = scalar_lea.vmem [#allocation8], %s562
          %s565 = ssub.s32 64, 64
          %566 = vsyncadd %s560, %s565
          %s567 = smul.addr %s41, 64
          %s568 = scalar_lea.hbm %s1, %s567
          %s570 = sshll.u32 %s563, 4
          %s571 = int_to_ptr.vmem [resolvable:$true] %s570
          %573 = dma.hbm_to_vmem [thread:$0]  %s568, 64, %s571, %s560
        $region80: #{tpu_custom_call.1} parent=71 // pred_fallthru
          _
      $region72: #{tpu_custom_call.1} parent=5 // pred_fallthru
        _
      %p574 = scmp.le.s32.totalorder 1, %s34
      %p575 = scmp.lt.s32.totalorder %s34, 3
      %p576 = pnand %p574, %p575
      %p577 = pneg %p576
      // Predicated region
      $region81: #{tpu_custom_call.1} parent=5 // pred_check
        _
      $region82: #{tpu_custom_call.1} parent=5 // pred_check_branch
        %579 = sbr.rel (%p576) target = $region84
      $region83: #{tpu_custom_call.1} parent=5 // pred_region
        %s580 = ssub.s32 %s34, 1
        %s581 = sand.u32 %s61, 1
        %s582 = scalar_lea.sflag [#allocation6], %s581
        %s583 = sand.u32 %s61, 1
        %s584 = smul.addr %s583, 8
        %s585 = scalar_lea.vmem [#allocation5], %s584
        // Predicated region
        $region85: #{tpu_custom_call.1} parent=83 // pred_check
          %p586 = pneg %p74
        $region86: #{tpu_custom_call.1} parent=83 // pred_check_branch
          %588 = sbr.rel (%p586) target = $region88
        $region87: #{tpu_custom_call.1} parent=83 // pred_region
          %589 = dma.done %s582, 128
        $region88: #{tpu_custom_call.1} parent=83 // pred_fallthru
          _
        %s590 = sand.u32 %s39, 1
        %s591 = scalar_lea.sflag [#allocation9], %s590
        %s592 = sand.u32 %s87, 1
        %s593 = smul.addr %s592, 4
        %s594 = scalar_lea.vmem [#allocation8], %s593
        // Predicated region
        $region89: #{tpu_custom_call.1} parent=83 // pred_check
          %p595 = pneg %p100
        $region90: #{tpu_custom_call.1} parent=83 // pred_check_branch
          %597 = sbr.rel (%p595) target = $region92
        $region91: #{tpu_custom_call.1} parent=83 // pred_region
          %598 = dma.done %s591, 64
        $region92: #{tpu_custom_call.1} parent=83 // pred_fallthru
          _
        // Predicated region
        $region93: #{tpu_custom_call.1} parent=83 // pred_check
          %p599 = pneg %p121
        $region94: #{tpu_custom_call.1} parent=83 // pred_check_branch
          %601 = sbr.rel (%p599) target = $region96
        $region95: #{tpu_custom_call.1} parent=83 // pred_region
          %602 = dma.done [#allocation9], 256
        $region96: #{tpu_custom_call.1} parent=83 // pred_fallthru
          _
        // Predicated region
        $region97: #{tpu_custom_call.1} parent=83 // pred_check
          %p603 = pneg %p163
        $region98: #{tpu_custom_call.1} parent=83 // pred_check_branch
          %605 = sbr.rel (%p603) target = $region100
        $region99: #{tpu_custom_call.1} parent=83 // pred_region
          %606 = dma.done [#allocation12], 256
        $region100: #{tpu_custom_call.1} parent=83 // pred_fallthru
          _
        // Predicated region
        $region101: #{tpu_custom_call.1} parent=83 // pred_check
          %p607 = pneg %p226
        $region102: #{tpu_custom_call.1} parent=83 // pred_check_branch
          %609 = sbr.rel (%p607) target = $region104
        $region103: #{tpu_custom_call.1} parent=83 // pred_region
          %610 = dma.done [#allocation12], 16
        $region104: #{tpu_custom_call.1} parent=83 // pred_fallthru
          _
        // Predicated region
        $region105: #{tpu_custom_call.1} parent=83 // pred_check
          %p611 = pneg %p247
        $region106: #{tpu_custom_call.1} parent=83 // pred_check_branch
          %613 = sbr.rel (%p611) target = $region108
        $region107: #{tpu_custom_call.1} parent=83 // pred_region
          %614 = dma.done [#allocation15], 16
        $region108: #{tpu_custom_call.1} parent=83 // pred_fallthru
          _
        // Predicated region
        $region109: #{tpu_custom_call.1} parent=83 // pred_check
          %p615 = pneg %p268
        $region110: #{tpu_custom_call.1} parent=83 // pred_check_branch
          %617 = sbr.rel (%p615) target = $region112
        $region111: #{tpu_custom_call.1} parent=83 // pred_region
          %618 = dma.done [#allocation15], 16
        $region112: #{tpu_custom_call.1} parent=83 // pred_fallthru
          _
        // Predicated region
        $region113: #{tpu_custom_call.1} parent=83 // pred_check
          %p619 = pneg %p331
        $region114: #{tpu_custom_call.1} parent=83 // pred_check_branch
          %621 = sbr.rel (%p619) target = $region116
        $region115: #{tpu_custom_call.1} parent=83 // pred_region
          %622 = dma.done [#allocation18], 256
        $region116: #{tpu_custom_call.1} parent=83 // pred_fallthru
          _
        %s623 = sand.u32 %s61, 1
        %s624 = scalar_lea.sflag [#allocation6], %s623
        %s625 = sand.u32 %s61, 1
        %s626 = smul.addr %s625, 8
        %s627 = scalar_lea.vmem [#allocation5], %s626
        %p628 = pneg %p74
        %p629 = pneg %p71
        %s630 = sand.u32 %s39, 1
        %s631 = scalar_lea.sflag [#allocation9], %s630
        %s632 = sand.u32 %s87, 1
        %s633 = smul.addr %s632, 4
        %s634 = scalar_lea.vmem [#allocation8], %s633
        %p635 = pneg %p100
        %p636 = pneg %p97
        %p637 = pneg %p121
        %p638 = pneg %p118
        %p639 = pneg %p142
        %p640 = pneg %p139
        %p641 = pneg %p163
        %p642 = pneg %p160
        %p643 = pneg %p184
        %p644 = pneg %p181
        %p645 = pneg %p205
        %p646 = pneg %p202
        %p647 = pneg %p226
        %p648 = pneg %p223
        %p649 = pneg %p247
        %p650 = pneg %p244
        %p651 = pneg %p268
        %p652 = pneg %p265
        %p653 = pneg %p289
        %p654 = pneg %p286
        %p655 = pneg %p310
        %p656 = pneg %p307
        %p657 = pneg %p331
        %p658 = pneg %p328
        %p659 = pneg %p352
        %p660 = pneg %p349
        %p661 = pneg %p373
        %p662 = pneg %p370
        %p663 = pneg %p394
        %p664 = pneg %p391
        %p665 = pneg %p422
        %p666 = pneg %p419
        %s667 = sand.u32 %s409, 1
        %s668 = scalar_lea.sflag [#allocation7], %s667
        %s669 = sand.u32 %s409, 1
        %s670 = smul.addr %s669, 8
        %s671 = scalar_lea.vmem [#allocation19], %s670
        %v673 = vld [vmem:[%s585] sm:$0xff]
        %p674 = scmp.eq.s32.totalorder %s44, 0
        // Predicated region
        $region117: #{tpu_custom_call.1} parent=83 // pred_check
          %p675 = pneg %p674
        $region118: #{tpu_custom_call.1} parent=83 // pred_check_branch
          %677 = sbr.rel (%p675) target = $region120
        $region119: #{tpu_custom_call.1} parent=83 // pred_region
          %v678 = vld [vmem:[%s594] sm:$0xf]
          %v679 = vld [vmem:[#allocation11] sm:$0xf]
          %v680 = vld [vmem:[#allocation11 + $0x4] sm:$0xf]
          %v681 = vld [vmem:[#allocation11 + $0x8] sm:$0xf]
          %v682 = vld [vmem:[#allocation11 + $0xc] sm:$0xf]
          %v683 = vld [vmem:[%s5] sm:$0x1]
          %v685 = vlaneseq
          %v686 = vshrl.u32 %v685, 7
          %v687 = vsub.s32 0, %v686
          %v688 = vrot.slane %v683, %v687
          %v694 = vunpack.c.l.b16 %v679
          %v695 = vunpack.c.l.b16 %v680
          %v696 = vunpack.c.l.b16 %v681
          %v697 = vunpack.c.l.b16 %v682
          %v698 = vpack.c.b16 %v695, %v694
          %v699 = vpack.c.b16 %v697, %v696
          %vm702 = vcmask 261120
          %v704 = vsel %vm702, %v678, 0
          %706 = vmatprep.subr.bf16.mxu0 0
          %707 = vmatpush1.bf16.msra.mxu0 %v698
          %708 = vmatprep.subr.bf16.mxu0 0
          %709 = vmatpush1.bf16.msra.mxu0 %v699
          %710 = vmatprep.subr.bf16.mxu0 0
          %711 = vmatpush1.bf16.msra.mxu0 0
          %712 = vmatprep.subr.bf16.mxu0 0
          %713 = vmatpush1.bf16.msra.mxu0 0
          %714 = vmatprep.subr.bf16.mxu0 0
          %715 = vmatpush1.bf16.msra.mxu0 0
          %716 = vmatprep.subr.bf16.mxu0 0
          %717 = vmatpush1.bf16.msra.mxu0 0
          %718 = vmatprep.subr.bf16.mxu0 0
          %719 = vmatpush1.bf16.msra.mxu0 0
          %720 = vmatprep.subr.bf16.mxu0 0
          %721 = vmatpush1.bf16.msra.mxu0 0
          %722 = vmatprep.subr.bf16.mxu0 0
          %723 = vmatpush1.bf16.msra.mxu0 0
          %724 = vmatprep.subr.bf16.mxu0 0
          %725 = vmatpush1.bf16.msra.mxu0 0
          %726 = vmatprep.subr.bf16.mxu0 0
          %727 = vmatpush1.bf16.msra.mxu0 0
          %728 = vmatprep.subr.bf16.mxu0 0
          %729 = vmatpush1.bf16.msra.mxu0 0
          %730 = vmatprep.subr.bf16.mxu0 0
          %731 = vmatpush1.bf16.msra.mxu0 0
          %732 = vmatprep.subr.bf16.mxu0 0
          %733 = vmatpush1.bf16.msra.mxu0 0
          %734 = vmatprep.subr.bf16.mxu0 0
          %735 = vmatpush1.bf16.msra.mxu0 0
          %736 = vmatprep.subr.bf16.mxu0 0
          %737 = vmatpush1.bf16.msra.mxu0 0
          %738 = vmatprep.mubr.bf16.mxu0 0
          %739 = vmatmul.mubr.bf16.gmra.mrb[0].mxu0 %v704
          %v740 = vpop.f32.mrb[0].mxu0
          %v741 = vadd.f32 %v688, %v740
          %v742 = vpop.f32.mrb[0].mxu0
          %v743 = vpop.f32.mrb[0].mxu0
          %v744 = vpop.f32.mrb[0].mxu0
          %745 = vdwg.mxu0
          %v746 = vpack.c.bf16 %v741, %v741
          %vm747 = vcmask 60416
          %748 = vst.msk [vmem:[#allocation2] sm:$0xf] %vm747, %v746
          %v750 = vunpack.c.l.b16 %v746
          %v751 = vpack.c.b16 %v750, %v750
          %752 = vrot.lane.b32.xlu0 %v751, 96
          %v753 = vpop.permute.xlu0 %752
          %755 = vst.msk [vmem:[#allocation3] sm:$0xf] %vm747, %v753
          %756 = vrot.lane.b32.xlu0 %v751, 120
          %v757 = vpop.permute.xlu0 %756
          %s759 = scalar_lea.vmem [#allocation2], 4
          %760 = vst.msk [vmem:[%s759] sm:$0xf] %vm747, %v757
          %761 = vrot.lane.b32.xlu0 %v751, 88
          %v762 = vpop.permute.xlu0 %761
          %s764 = scalar_lea.vmem [#allocation3], 4
          %765 = vst.msk [vmem:[%s764] sm:$0xf] %vm747, %v762
          %766 = vrot.lane.b32.xlu0 %v751, 112
          %v767 = vpop.permute.xlu0 %766
          %s769 = scalar_lea.vmem [#allocation2], 8
          %770 = vst.msk [vmem:[%s769] sm:$0xf] %vm747, %v767
          %771 = vrot.lane.b32.xlu0 %v751, 80
          %v772 = vpop.permute.xlu0 %771
          %s774 = scalar_lea.vmem [#allocation3], 8
          %775 = vst.msk [vmem:[%s774] sm:$0xf] %vm747, %v772
          %776 = vrot.lane.b32.xlu0 %v751, 104
          %v777 = vpop.permute.xlu0 %776
          %s779 = scalar_lea.vmem [#allocation2], 12
          %780 = vst.msk [vmem:[%s779] sm:$0xf] %vm747, %v777
          %781 = vrot.lane.b32.xlu0 %v751, 72
          %v782 = vpop.permute.xlu0 %781
          %s784 = scalar_lea.vmem [#allocation3], 12
          %785 = vst.msk [vmem:[%s784] sm:$0xf] %vm747, %v782
        $region120: #{tpu_custom_call.1} parent=83 // pred_fallthru
          _
        %v786 = vpack.c.bf16 %v673, %v673
        %v787 = vld [vmem:[#allocation10] sm:$0xf]
        %v788 = vld [vmem:[#allocation10 + $0x4] sm:$0xf]
        %v789 = vld [vmem:[#allocation10 + $0x8] sm:$0xf]
        %v790 = vld [vmem:[#allocation10 + $0xc] sm:$0xf]
        %v791 = vld [vmem:[%s3] sm:$0x1]
        %v793 = vlaneseq
        %v794 = vshrl.u32 %v793, 7
        %v795 = vsub.s32 0, %v794
        %v796 = vrot.slane %v791, %v795
        %v802 = vunpack.c.l.b16 %v787
        %v803 = vunpack.c.l.b16 %v788
        %v804 = vunpack.c.l.b16 %v789
        %v805 = vunpack.c.l.b16 %v790
        %v806 = vpack.c.b16 %v803, %v802
        %v807 = vpack.c.b16 %v805, %v804
        %vm810 = vcmask 261120
        %v812 = vsel %vm810, %v786, 0
        %814 = vmatprep.subr.bf16.mxu0 0
        %815 = vmatpush1.bf16.msra.mxu0 %v806
        %816 = vmatprep.subr.bf16.mxu0 0
        %817 = vmatpush1.bf16.msra.mxu0 %v807
        %818 = vmatprep.subr.bf16.mxu0 0
        %819 = vmatpush1.bf16.msra.mxu0 0
        %820 = vmatprep.subr.bf16.mxu0 0
        %821 = vmatpush1.bf16.msra.mxu0 0
        %822 = vmatprep.subr.bf16.mxu0 0
        %823 = vmatpush1.bf16.msra.mxu0 0
        %824 = vmatprep.subr.bf16.mxu0 0
        %825 = vmatpush1.bf16.msra.mxu0 0
        %826 = vmatprep.subr.bf16.mxu0 0
        %827 = vmatpush1.bf16.msra.mxu0 0
        %828 = vmatprep.subr.bf16.mxu0 0
        %829 = vmatpush1.bf16.msra.mxu0 0
        %830 = vmatprep.subr.bf16.mxu0 0
        %831 = vmatpush1.bf16.msra.mxu0 0
        %832 = vmatprep.subr.bf16.mxu0 0
        %833 = vmatpush1.bf16.msra.mxu0 0
        %834 = vmatprep.subr.bf16.mxu0 0
        %835 = vmatpush1.bf16.msra.mxu0 0
        %836 = vmatprep.subr.bf16.mxu0 0
        %837 = vmatpush1.bf16.msra.mxu0 0
        %838 = vmatprep.subr.bf16.mxu0 0
        %839 = vmatpush1.bf16.msra.mxu0 0
        %840 = vmatprep.subr.bf16.mxu0 0
        %841 = vmatpush1.bf16.msra.mxu0 0
        %842 = vmatprep.subr.bf16.mxu0 0
        %843 = vmatpush1.bf16.msra.mxu0 0
        %844 = vmatprep.subr.bf16.mxu0 0
        %845 = vmatpush1.bf16.msra.mxu0 0
        %846 = vmatprep.mubr.bf16.mxu0 0
        %847 = vmatmul.mubr.bf16.gmra.mrb[0].mxu0 %v812
        %v848 = vpop.f32.mrb[0].mxu0
        %v849 = vadd.f32 %v796, %v848
        %v850 = vpop.f32.mrb[0].mxu0
        %v851 = vpop.f32.mrb[0].mxu0
        %v852 = vpop.f32.mrb[0].mxu0
        %853 = vdwg.mxu0
        %v854 = vpack.c.bf16 %v849, %v849
        %vm855 = vcmask 60416
        %856 = vst.msk [vmem:[#allocation4] sm:$0xf] %vm855, %v854
        %v858 = vunpack.c.l.b16 %v854
        %v859 = vpack.c.b16 %v858, %v858
        %860 = vrot.lane.b32.xlu0 %v859, 120
        %v861 = vpop.permute.xlu0 %860
        %s863 = scalar_lea.vmem [#allocation4], 4
        %864 = vst.msk [vmem:[%s863] sm:$0xf] %vm855, %v861
        %865 = vrot.lane.b32.xlu0 %v859, 112
        %v866 = vpop.permute.xlu0 %865
        %s868 = scalar_lea.vmem [#allocation4], 8
        %869 = vst.msk [vmem:[%s868] sm:$0xf] %vm855, %v866
        %870 = vrot.lane.b32.xlu0 %v859, 104
        %v871 = vpop.permute.xlu0 %870
        %s873 = scalar_lea.vmem [#allocation4], 12
        %874 = vst.msk [vmem:[%s873] sm:$0xf] %vm855, %v871
        %v875 = vld [vmem:[#allocation4] sm:$0xf]
        %v876 = vld [vmem:[#allocation4 + $0x4] sm:$0xf]
        %v877 = vld [vmem:[#allocation4 + $0x8] sm:$0xf]
        %v878 = vld [vmem:[#allocation4 + $0xc] sm:$0xf]
        %v879 = vld [vmem:[#allocation2] sm:$0xf]
        %v880 = vld [vmem:[#allocation2 + $0x4] sm:$0xf]
        %v881 = vld [vmem:[#allocation2 + $0x8] sm:$0xf]
        %v882 = vld [vmem:[#allocation2 + $0xc] sm:$0xf]
        %vm883 = vcmask 64512
        %v885 = vsel %vm883, %v875, 0
        %v888 = vsel %vm883, %v879, 0
        %890 = vmatprep.subr.bf16.mxu0 0
        %891 = vmatpush1.bf16.xpose.msra.mxu0 %v888
        %892 = vmatprep.subr.bf16.mxu0 0
        %893 = vmatpush1.bf16.xpose.msra.mxu0 0
        %894 = vmatprep.subr.bf16.mxu0 0
        %895 = vmatpush1.bf16.xpose.msra.mxu0 0
        %896 = vmatprep.subr.bf16.mxu0 0
        %897 = vmatpush1.bf16.xpose.msra.mxu0 0
        %898 = vmatprep.subr.bf16.mxu0 0
        %899 = vmatpush1.bf16.xpose.msra.mxu0 0
        %900 = vmatprep.subr.bf16.mxu0 0
        %901 = vmatpush1.bf16.xpose.msra.mxu0 0
        %902 = vmatprep.subr.bf16.mxu0 0
        %903 = vmatpush1.bf16.xpose.msra.mxu0 0
        %904 = vmatprep.subr.bf16.mxu0 0
        %905 = vmatpush1.bf16.xpose.msra.mxu0 0
        %906 = vmatprep.subr.bf16.mxu0 0
        %907 = vmatpush1.bf16.xpose.msra.mxu0 0
        %908 = vmatprep.subr.bf16.mxu0 0
        %909 = vmatpush1.bf16.xpose.msra.mxu0 0
        %910 = vmatprep.subr.bf16.mxu0 0
        %911 = vmatpush1.bf16.xpose.msra.mxu0 0
        %912 = vmatprep.subr.bf16.mxu0 0
        %913 = vmatpush1.bf16.xpose.msra.mxu0 0
        %914 = vmatprep.subr.bf16.mxu0 0
        %915 = vmatpush1.bf16.xpose.msra.mxu0 0
        %916 = vmatprep.subr.bf16.mxu0 0
        %917 = vmatpush1.bf16.xpose.msra.mxu0 0
        %918 = vmatprep.subr.bf16.mxu0 0
        %919 = vmatpush1.bf16.xpose.msra.mxu0 0
        %920 = vmatprep.subr.bf16.mxu0 0
        %921 = vmatpush1.bf16.xpose.msra.mxu0 0
        %922 = vmatprep.mubr.bf16.mxu0 0
        %923 = vmatmul.mubr.bf16.gmra.mrb[0].mxu0 %v885
        %v924 = vpop.f32.mrb[0].mxu0
        %v925 = vadd.f32 0.0, %v924
        %v926 = vpop.f32.mrb[0].mxu0
        %v927 = vpop.f32.mrb[0].mxu0
        %v928 = vpop.f32.mrb[0].mxu0
        %929 = vdwg.mxu0
        %v931 = vsel %vm883, %v876, 0
        %v934 = vsel %vm883, %v880, 0
        %936 = vmatprep.subr.bf16.mxu0 0
        %937 = vmatpush1.bf16.xpose.msra.mxu0 %v934
        %938 = vmatprep.subr.bf16.mxu0 0
        %939 = vmatpush1.bf16.xpose.msra.mxu0 0
        %940 = vmatprep.subr.bf16.mxu0 0
        %941 = vmatpush1.bf16.xpose.msra.mxu0 0
        %942 = vmatprep.subr.bf16.mxu0 0
        %943 = vmatpush1.bf16.xpose.msra.mxu0 0
        %944 = vmatprep.subr.bf16.mxu0 0
        %945 = vmatpush1.bf16.xpose.msra.mxu0 0
        %946 = vmatprep.subr.bf16.mxu0 0
        %947 = vmatpush1.bf16.xpose.msra.mxu0 0
        %948 = vmatprep.subr.bf16.mxu0 0
        %949 = vmatpush1.bf16.xpose.msra.mxu0 0
        %950 = vmatprep.subr.bf16.mxu0 0
        %951 = vmatpush1.bf16.xpose.msra.mxu0 0
        %952 = vmatprep.subr.bf16.mxu0 0
        %953 = vmatpush1.bf16.xpose.msra.mxu0 0
        %954 = vmatprep.subr.bf16.mxu0 0
        %955 = vmatpush1.bf16.xpose.msra.mxu0 0
        %956 = vmatprep.subr.bf16.mxu0 0
        %957 = vmatpush1.bf16.xpose.msra.mxu0 0
        %958 = vmatprep.subr.bf16.mxu0 0
        %959 = vmatpush1.bf16.xpose.msra.mxu0 0
        %960 = vmatprep.subr.bf16.mxu0 0
        %961 = vmatpush1.bf16.xpose.msra.mxu0 0
        %962 = vmatprep.subr.bf16.mxu0 0
        %963 = vmatpush1.bf16.xpose.msra.mxu0 0
        %964 = vmatprep.subr.bf16.mxu0 0
        %965 = vmatpush1.bf16.xpose.msra.mxu0 0
        %966 = vmatprep.subr.bf16.mxu0 0
        %967 = vmatpush1.bf16.xpose.msra.mxu0 0
        %968 = vmatprep.mubr.bf16.mxu0 0
        %969 = vmatmul.mubr.bf16.gmra.mrb[0].mxu0 %v931
        %v970 = vpop.f32.mrb[0].mxu0
        %v971 = vadd.f32 0.0, %v970
        %v972 = vpop.f32.mrb[0].mxu0
        %v973 = vpop.f32.mrb[0].mxu0
        %v974 = vpop.f32.mrb[0].mxu0
        %975 = vdwg.mxu0
        %v977 = vsel %vm883, %v877, 0
        %v980 = vsel %vm883, %v881, 0
        %982 = vmatprep.subr.bf16.mxu0 0
        %983 = vmatpush1.bf16.xpose.msra.mxu0 %v980
        %984 = vmatprep.subr.bf16.mxu0 0
        %985 = vmatpush1.bf16.xpose.msra.mxu0 0
        %986 = vmatprep.subr.bf16.mxu0 0
        %987 = vmatpush1.bf16.xpose.msra.mxu0 0
        %988 = vmatprep.subr.bf16.mxu0 0
        %989 = vmatpush1.bf16.xpose.msra.mxu0 0
        %990 = vmatprep.subr.bf16.mxu0 0
        %991 = vmatpush1.bf16.xpose.msra.mxu0 0
        %992 = vmatprep.subr.bf16.mxu0 0
        %993 = vmatpush1.bf16.xpose.msra.mxu0 0
        %994 = vmatprep.subr.bf16.mxu0 0
        %995 = vmatpush1.bf16.xpose.msra.mxu0 0
        %996 = vmatprep.subr.bf16.mxu0 0
        %997 = vmatpush1.bf16.xpose.msra.mxu0 0
        %998 = vmatprep.subr.bf16.mxu0 0
        %999 = vmatpush1.bf16.xpose.msra.mxu0 0
        %1000 = vmatprep.subr.bf16.mxu0 0
        %1001 = vmatpush1.bf16.xpose.msra.mxu0 0
        %1002 = vmatprep.subr.bf16.mxu0 0
        %1003 = vmatpush1.bf16.xpose.msra.mxu0 0
        %1004 = vmatprep.subr.bf16.mxu0 0
        %1005 = vmatpush1.bf16.xpose.msra.mxu0 0
        %1006 = vmatprep.subr.bf16.mxu0 0
        %1007 = vmatpush1.bf16.xpose.msra.mxu0 0
        %1008 = vmatprep.subr.bf16.mxu0 0
        %1009 = vmatpush1.bf16.xpose.msra.mxu0 0
        %1010 = vmatprep.subr.bf16.mxu0 0
        %1011 = vmatpush1.bf16.xpose.msra.mxu0 0
        %1012 = vmatprep.subr.bf16.mxu0 0
        %1013 = vmatpush1.bf16.xpose.msra.mxu0 0
        %1014 = vmatprep.mubr.bf16.mxu0 0
        %1015 = vmatmul.mubr.bf16.gmra.mrb[0].mxu0 %v977
        %v1016 = vpop.f32.mrb[0].mxu0
        %v1017 = vadd.f32 0.0, %v1016
        %v1018 = vpop.f32.mrb[0].mxu0
        %v1019 = vpop.f32.mrb[0].mxu0
        %v1020 = vpop.f32.mrb[0].mxu0
        %1021 = vdwg.mxu0
        %v1023 = vsel %vm883, %v878, 0
        %v1026 = vsel %vm883, %v882, 0
        %1028 = vmatprep.subr.bf16.mxu0 0
        %1029 = vmatpush1.bf16.xpose.msra.mxu0 %v1026
        %1030 = vmatprep.subr.bf16.mxu0 0
        %1031 = vmatpush1.bf16.xpose.msra.mxu0 0
        %1032 = vmatprep.subr.bf16.mxu0 0
        %1033 = vmatpush1.bf16.xpose.msra.mxu0 0
        %1034 = vmatprep.subr.bf16.mxu0 0
        %1035 = vmatpush1.bf16.xpose.msra.mxu0 0
        %1036 = vmatprep.subr.bf16.mxu0 0
        %1037 = vmatpush1.bf16.xpose.msra.mxu0 0
        %1038 = vmatprep.subr.bf16.mxu0 0
        %1039 = vmatpush1.bf16.xpose.msra.mxu0 0
        %1040 = vmatprep.subr.bf16.mxu0 0
        %1041 = vmatpush1.bf16.xpose.msra.mxu0 0
        %1042 = vmatprep.subr.bf16.mxu0 0
        %1043 = vmatpush1.bf16.xpose.msra.mxu0 0
        %1044 = vmatprep.subr.bf16.mxu0 0
        %1045 = vmatpush1.bf16.xpose.msra.mxu0 0
        %1046 = vmatprep.subr.bf16.mxu0 0
        %1047 = vmatpush1.bf16.xpose.msra.mxu0 0
        %1048 = vmatprep.subr.bf16.mxu0 0
        %1049 = vmatpush1.bf16.xpose.msra.mxu0 0
        %1050 = vmatprep.subr.bf16.mxu0 0
        %1051 = vmatpush1.bf16.xpose.msra.mxu0 0
        %1052 = vmatprep.subr.bf16.mxu0 0
        %1053 = vmatpush1.bf16.xpose.msra.mxu0 0
        %1054 = vmatprep.subr.bf16.mxu0 0
        %1055 = vmatpush1.bf16.xpose.msra.mxu0 0
        %1056 = vmatprep.subr.bf16.mxu0 0
        %1057 = vmatpush1.bf16.xpose.msra.mxu0 0
        %1058 = vmatprep.subr.bf16.mxu0 0
        %1059 = vmatpush1.bf16.xpose.msra.mxu0 0
        %1060 = vmatprep.mubr.bf16.mxu0 0
        %1061 = vmatmul.mubr.bf16.gmra.mrb[0].mxu0 %v1023
        %v1062 = vpop.f32.mrb[0].mxu0
        %v1063 = vadd.f32 0.0, %v1062
        %v1064 = vpop.f32.mrb[0].mxu0
        %v1065 = vpop.f32.mrb[0].mxu0
        %v1066 = vpop.f32.mrb[0].mxu0
        %1067 = vdwg.mxu0
        %v1068 = vsel %vm883, %v925, -inf
        %1069 = vmax.xlane.f32.xlu0 %v1068
        %v1070 = vpop.xlane.xlu0 %1069
        %v1071 = vsel %vm883, %v971, -inf
        %1072 = vmax.xlane.f32.xlu0 %v1071
        %v1073 = vpop.xlane.xlu0 %1072
        %v1074 = vsel %vm883, %v1017, -inf
        %1075 = vmax.xlane.f32.xlu0 %v1074
        %v1076 = vpop.xlane.xlu0 %1075
        %v1077 = vsel %vm883, %v1063, -inf
        %1078 = vmax.xlane.f32.xlu0 %v1077
        %v1079 = vpop.xlane.xlu0 %1078
        %v1080 = vsub.f32 %v925, %v1070
        %v1081 = vsub.f32 %v971, %v1073
        %v1082 = vsub.f32 %v1017, %v1076
        %v1083 = vsub.f32 %v1063, %v1079
        %v1084 = vmul.f32 %v1080, 1.442695
        %v1085 = vpow.pop %v1084
        %v1086 = vmul.f32 %v1081, 1.442695
        %v1087 = vpow.pop %v1086
        %v1088 = vmul.f32 %v1082, 1.442695
        %v1089 = vpow.pop %v1088
        %v1090 = vmul.f32 %v1083, 1.442695
        %v1091 = vpow.pop %v1090
        %v1092 = vsel %vm883, %v1085, 0.0
        %1093 = vadd.xlane.f32.xlu0 %v1092
        %v1094 = vpop.xlane.xlu0 %1093
        %v1095 = vsel %vm883, %v1087, 0.0
        %1096 = vadd.xlane.f32.xlu0 %v1095
        %v1097 = vpop.xlane.xlu0 %1096
        %v1098 = vsel %vm883, %v1089, 0.0
        %1099 = vadd.xlane.f32.xlu0 %v1098
        %v1100 = vpop.xlane.xlu0 %1099
        %v1101 = vsel %vm883, %v1091, 0.0
        %1102 = vadd.xlane.f32.xlu0 %v1101
        %v1103 = vpop.xlane.xlu0 %1102
        %v1104 = vrcp.pop %v1094
        %v1105 = vrcp.pop %v1097
        %v1106 = vrcp.pop %v1100
        %v1107 = vrcp.pop %v1103
        %v1108 = vmul.f32 %v1085, %v1104
        %v1109 = vmul.f32 %v1087, %v1105
        %v1110 = vmul.f32 %v1089, %v1106
        %v1111 = vmul.f32 %v1091, %v1107
        %v1112 = vpack.c.bf16 %v1108, %v1108
        %v1113 = vpack.c.bf16 %v1109, %v1109
        %v1114 = vpack.c.bf16 %v1110, %v1110
        %v1115 = vpack.c.bf16 %v1111, %v1111
        %v1116 = vld [vmem:[#allocation3] sm:$0xf]
        %v1117 = vld [vmem:[#allocation3 + $0x4] sm:$0xf]
        %v1118 = vld [vmem:[#allocation3 + $0x8] sm:$0xf]
        %v1119 = vld [vmem:[#allocation3 + $0xc] sm:$0xf]
        %v1121 = vsel %vm883, %v1112, 0
        %vm1123 = vcmask 1043456
        %v1125 = vsel %vm1123, %v1116, 0
        %1127 = vmatprep.subr.bf16.mxu0 0
        %1128 = vmatpush1.bf16.msra.mxu0 %v1125
        %1129 = vmatprep.subr.bf16.mxu0 0
        %1130 = vmatpush1.bf16.msra.mxu0 0
        %1131 = vmatprep.subr.bf16.mxu0 0
        %1132 = vmatpush1.bf16.msra.mxu0 0
        %1133 = vmatprep.subr.bf16.mxu0 0
        %1134 = vmatpush1.bf16.msra.mxu0 0
        %1135 = vmatprep.subr.bf16.mxu0 0
        %1136 = vmatpush1.bf16.msra.mxu0 0
        %1137 = vmatprep.subr.bf16.mxu0 0
        %1138 = vmatpush1.bf16.msra.mxu0 0
        %1139 = vmatprep.subr.bf16.mxu0 0
        %1140 = vmatpush1.bf16.msra.mxu0 0
        %1141 = vmatprep.subr.bf16.mxu0 0
        %1142 = vmatpush1.bf16.msra.mxu0 0
        %1143 = vmatprep.subr.bf16.mxu0 0
        %1144 = vmatpush1.bf16.msra.mxu0 0
        %1145 = vmatprep.subr.bf16.mxu0 0
        %1146 = vmatpush1.bf16.msra.mxu0 0
        %1147 = vmatprep.subr.bf16.mxu0 0
        %1148 = vmatpush1.bf16.msra.mxu0 0
        %1149 = vmatprep.subr.bf16.mxu0 0
        %1150 = vmatpush1.bf16.msra.mxu0 0
        %1151 = vmatprep.subr.bf16.mxu0 0
        %1152 = vmatpush1.bf16.msra.mxu0 0
        %1153 = vmatprep.subr.bf16.mxu0 0
        %1154 = vmatpush1.bf16.msra.mxu0 0
        %1155 = vmatprep.subr.bf16.mxu0 0
        %1156 = vmatpush1.bf16.msra.mxu0 0
        %1157 = vmatprep.subr.bf16.mxu0 0
        %1158 = vmatpush1.bf16.msra.mxu0 0
        %1159 = vmatprep.mubr.bf16.mxu0 0
        %1160 = vmatmul.mubr.bf16.gmra.mrb[0].mxu0 %v1121
        %v1161 = vpop.f32.mrb[0].mxu0
        %v1162 = vadd.f32 0.0, %v1161
        %v1163 = vpop.f32.mrb[0].mxu0
        %v1164 = vpop.f32.mrb[0].mxu0
        %v1165 = vpop.f32.mrb[0].mxu0
        %1166 = vdwg.mxu0
        %v1168 = vsel %vm883, %v1113, 0
        %v1171 = vsel %vm1123, %v1117, 0
        %1173 = vmatprep.subr.bf16.mxu0 0
        %1174 = vmatpush1.bf16.msra.mxu0 %v1171
        %1175 = vmatprep.subr.bf16.mxu0 0
        %1176 = vmatpush1.bf16.msra.mxu0 0
        %1177 = vmatprep.subr.bf16.mxu0 0
        %1178 = vmatpush1.bf16.msra.mxu0 0
        %1179 = vmatprep.subr.bf16.mxu0 0
        %1180 = vmatpush1.bf16.msra.mxu0 0
        %1181 = vmatprep.subr.bf16.mxu0 0
        %1182 = vmatpush1.bf16.msra.mxu0 0
        %1183 = vmatprep.subr.bf16.mxu0 0
        %1184 = vmatpush1.bf16.msra.mxu0 0
        %1185 = vmatprep.subr.bf16.mxu0 0
        %1186 = vmatpush1.bf16.msra.mxu0 0
        %1187 = vmatprep.subr.bf16.mxu0 0
        %1188 = vmatpush1.bf16.msra.mxu0 0
        %1189 = vmatprep.subr.bf16.mxu0 0
        %1190 = vmatpush1.bf16.msra.mxu0 0
        %1191 = vmatprep.subr.bf16.mxu0 0
        %1192 = vmatpush1.bf16.msra.mxu0 0
        %1193 = vmatprep.subr.bf16.mxu0 0
        %1194 = vmatpush1.bf16.msra.mxu0 0
        %1195 = vmatprep.subr.bf16.mxu0 0
        %1196 = vmatpush1.bf16.msra.mxu0 0
        %1197 = vmatprep.subr.bf16.mxu0 0
        %1198 = vmatpush1.bf16.msra.mxu0 0
        %1199 = vmatprep.subr.bf16.mxu0 0
        %1200 = vmatpush1.bf16.msra.mxu0 0
        %1201 = vmatprep.subr.bf16.mxu0 0
        %1202 = vmatpush1.bf16.msra.mxu0 0
        %1203 = vmatprep.subr.bf16.mxu0 0
        %1204 = vmatpush1.bf16.msra.mxu0 0
        %1205 = vmatprep.mubr.bf16.mxu0 0
        %1206 = vmatmul.mubr.bf16.gmra.mrb[0].mxu0 %v1168
        %v1207 = vpop.f32.mrb[0].mxu0
        %v1208 = vadd.f32 0.0, %v1207
        %v1209 = vpop.f32.mrb[0].mxu0
        %v1210 = vpop.f32.mrb[0].mxu0
        %v1211 = vpop.f32.mrb[0].mxu0
        %1212 = vdwg.mxu0
        %v1214 = vsel %vm883, %v1114, 0
        %v1217 = vsel %vm1123, %v1118, 0
        %1219 = vmatprep.subr.bf16.mxu0 0
        %1220 = vmatpush1.bf16.msra.mxu0 %v1217
        %1221 = vmatprep.subr.bf16.mxu0 0
        %1222 = vmatpush1.bf16.msra.mxu0 0
        %1223 = vmatprep.subr.bf16.mxu0 0
        %1224 = vmatpush1.bf16.msra.mxu0 0
        %1225 = vmatprep.subr.bf16.mxu0 0
        %1226 = vmatpush1.bf16.msra.mxu0 0
        %1227 = vmatprep.subr.bf16.mxu0 0
        %1228 = vmatpush1.bf16.msra.mxu0 0
        %1229 = vmatprep.subr.bf16.mxu0 0
        %1230 = vmatpush1.bf16.msra.mxu0 0
        %1231 = vmatprep.subr.bf16.mxu0 0
        %1232 = vmatpush1.bf16.msra.mxu0 0
        %1233 = vmatprep.subr.bf16.mxu0 0
        %1234 = vmatpush1.bf16.msra.mxu0 0
        %1235 = vmatprep.subr.bf16.mxu0 0
        %1236 = vmatpush1.bf16.msra.mxu0 0
        %1237 = vmatprep.subr.bf16.mxu0 0
        %1238 = vmatpush1.bf16.msra.mxu0 0
        %1239 = vmatprep.subr.bf16.mxu0 0
        %1240 = vmatpush1.bf16.msra.mxu0 0
        %1241 = vmatprep.subr.bf16.mxu0 0
        %1242 = vmatpush1.bf16.msra.mxu0 0
        %1243 = vmatprep.subr.bf16.mxu0 0
        %1244 = vmatpush1.bf16.msra.mxu0 0
        %1245 = vmatprep.subr.bf16.mxu0 0
        %1246 = vmatpush1.bf16.msra.mxu0 0
        %1247 = vmatprep.subr.bf16.mxu0 0
        %1248 = vmatpush1.bf16.msra.mxu0 0
        %1249 = vmatprep.subr.bf16.mxu0 0
        %1250 = vmatpush1.bf16.msra.mxu0 0
        %1251 = vmatprep.mubr.bf16.mxu0 0
        %1252 = vmatmul.mubr.bf16.gmra.mrb[0].mxu0 %v1214
        %v1253 = vpop.f32.mrb[0].mxu0
        %v1254 = vadd.f32 0.0, %v1253
        %v1255 = vpop.f32.mrb[0].mxu0
        %v1256 = vpop.f32.mrb[0].mxu0
        %v1257 = vpop.f32.mrb[0].mxu0
        %1258 = vdwg.mxu0
        %v1260 = vsel %vm883, %v1115, 0
        %v1263 = vsel %vm1123, %v1119, 0
        %1265 = vmatprep.subr.bf16.mxu0 0
        %1266 = vmatpush1.bf16.msra.mxu0 %v1263
        %1267 = vmatprep.subr.bf16.mxu0 0
        %1268 = vmatpush1.bf16.msra.mxu0 0
        %1269 = vmatprep.subr.bf16.mxu0 0
        %1270 = vmatpush1.bf16.msra.mxu0 0
        %1271 = vmatprep.subr.bf16.mxu0 0
        %1272 = vmatpush1.bf16.msra.mxu0 0
        %1273 = vmatprep.subr.bf16.mxu0 0
        %1274 = vmatpush1.bf16.msra.mxu0 0
        %1275 = vmatprep.subr.bf16.mxu0 0
        %1276 = vmatpush1.bf16.msra.mxu0 0
        %1277 = vmatprep.subr.bf16.mxu0 0
        %1278 = vmatpush1.bf16.msra.mxu0 0
        %1279 = vmatprep.subr.bf16.mxu0 0
        %1280 = vmatpush1.bf16.msra.mxu0 0
        %1281 = vmatprep.subr.bf16.mxu0 0
        %1282 = vmatpush1.bf16.msra.mxu0 0
        %1283 = vmatprep.subr.bf16.mxu0 0
        %1284 = vmatpush1.bf16.msra.mxu0 0
        %1285 = vmatprep.subr.bf16.mxu0 0
        %1286 = vmatpush1.bf16.msra.mxu0 0
        %1287 = vmatprep.subr.bf16.mxu0 0
        %1288 = vmatpush1.bf16.msra.mxu0 0
        %1289 = vmatprep.subr.bf16.mxu0 0
        %1290 = vmatpush1.bf16.msra.mxu0 0
        %1291 = vmatprep.subr.bf16.mxu0 0
        %1292 = vmatpush1.bf16.msra.mxu0 0
        %1293 = vmatprep.subr.bf16.mxu0 0
        %1294 = vmatpush1.bf16.msra.mxu0 0
        %1295 = vmatprep.subr.bf16.mxu0 0
        %1296 = vmatpush1.bf16.msra.mxu0 0
        %1297 = vmatprep.mubr.bf16.mxu0 0
        %1298 = vmatmul.mubr.bf16.gmra.mrb[0].mxu0 %v1260
        %v1299 = vpop.f32.mrb[0].mxu0
        %v1300 = vadd.f32 0.0, %v1299
        %v1301 = vpop.f32.mrb[0].mxu0
        %v1302 = vpop.f32.mrb[0].mxu0
        %v1303 = vpop.f32.mrb[0].mxu0
        %1304 = vdwg.mxu0
        %v1305 = vpack.c.bf16 %v1162, %v1162
        %v1306 = vpack.c.bf16 %v1208, %v1208
        %v1307 = vpack.c.bf16 %v1254, %v1254
        %v1308 = vpack.c.bf16 %v1300, %v1300
        %v1309 = vld [vmem:[%s6] sm:$0xf]
        %s1310 = scalar_lea.vmem %s6, 4
        %v1311 = vld [vmem:[%s1310] sm:$0xf]
        %v1313 = vsel %vm883, %v1306, 0
        %v1316 = vsel %vm1123, %v1311, 0
        %1318 = vmatprep.subr.bf16.mxu0 0
        %1319 = vmatpush1.bf16.msra.mxu0 %v1316
        %1320 = vmatprep.subr.bf16.mxu0 0
        %1321 = vmatpush1.bf16.msra.mxu0 0
        %1322 = vmatprep.subr.bf16.mxu0 0
        %1323 = vmatpush1.bf16.msra.mxu0 0
        %1324 = vmatprep.subr.bf16.mxu0 0
        %1325 = vmatpush1.bf16.msra.mxu0 0
        %1326 = vmatprep.subr.bf16.mxu0 0
        %1327 = vmatpush1.bf16.msra.mxu0 0
        %1328 = vmatprep.subr.bf16.mxu0 0
        %1329 = vmatpush1.bf16.msra.mxu0 0
        %1330 = vmatprep.subr.bf16.mxu0 0
        %1331 = vmatpush1.bf16.msra.mxu0 0
        %1332 = vmatprep.subr.bf16.mxu0 0
        %1333 = vmatpush1.bf16.msra.mxu0 0
        %1334 = vmatprep.subr.bf16.mxu0 0
        %1335 = vmatpush1.bf16.msra.mxu0 0
        %1336 = vmatprep.subr.bf16.mxu0 0
        %1337 = vmatpush1.bf16.msra.mxu0 0
        %1338 = vmatprep.subr.bf16.mxu0 0
        %1339 = vmatpush1.bf16.msra.mxu0 0
        %1340 = vmatprep.subr.bf16.mxu0 0
        %1341 = vmatpush1.bf16.msra.mxu0 0
        %1342 = vmatprep.subr.bf16.mxu0 0
        %1343 = vmatpush1.bf16.msra.mxu0 0
        %1344 = vmatprep.subr.bf16.mxu0 0
        %1345 = vmatpush1.bf16.msra.mxu0 0
        %1346 = vmatprep.subr.bf16.mxu0 0
        %1347 = vmatpush1.bf16.msra.mxu0 0
        %1348 = vmatprep.subr.bf16.mxu0 0
        %1349 = vmatpush1.bf16.msra.mxu0 0
        %1350 = vmatprep.mubr.bf16.mxu0 0
        %1351 = vmatmul.mubr.bf16.gmra.mrb[0].mxu0 %v1313
        %v1352 = vpop.f32.mrb[0].mxu0
        %v1353 = vadd.f32 0.0, %v1352
        %v1354 = vpop.f32.mrb[0].mxu0
        %v1355 = vpop.f32.mrb[0].mxu0
        %v1356 = vpop.f32.mrb[0].mxu0
        %1357 = vdwg.mxu0
        %v1359 = vsel %vm883, %v1305, 0
        %v1362 = vsel %vm1123, %v1309, 0
        %1364 = vmatprep.subr.bf16.mxu0 0
        %1365 = vmatpush1.bf16.msra.mxu0 %v1362
        %1366 = vmatprep.subr.bf16.mxu0 0
        %1367 = vmatpush1.bf16.msra.mxu0 0
        %1368 = vmatprep.subr.bf16.mxu0 0
        %1369 = vmatpush1.bf16.msra.mxu0 0
        %1370 = vmatprep.subr.bf16.mxu0 0
        %1371 = vmatpush1.bf16.msra.mxu0 0
        %1372 = vmatprep.subr.bf16.mxu0 0
        %1373 = vmatpush1.bf16.msra.mxu0 0
        %1374 = vmatprep.subr.bf16.mxu0 0
        %1375 = vmatpush1.bf16.msra.mxu0 0
        %1376 = vmatprep.subr.bf16.mxu0 0
        %1377 = vmatpush1.bf16.msra.mxu0 0
        %1378 = vmatprep.subr.bf16.mxu0 0
        %1379 = vmatpush1.bf16.msra.mxu0 0
        %1380 = vmatprep.subr.bf16.mxu0 0
        %1381 = vmatpush1.bf16.msra.mxu0 0
        %1382 = vmatprep.subr.bf16.mxu0 0
        %1383 = vmatpush1.bf16.msra.mxu0 0
        %1384 = vmatprep.subr.bf16.mxu0 0
        %1385 = vmatpush1.bf16.msra.mxu0 0
        %1386 = vmatprep.subr.bf16.mxu0 0
        %1387 = vmatpush1.bf16.msra.mxu0 0
        %1388 = vmatprep.subr.bf16.mxu0 0
        %1389 = vmatpush1.bf16.msra.mxu0 0
        %1390 = vmatprep.subr.bf16.mxu0 0
        %1391 = vmatpush1.bf16.msra.mxu0 0
        %1392 = vmatprep.subr.bf16.mxu0 0
        %1393 = vmatpush1.bf16.msra.mxu0 0
        %1394 = vmatprep.subr.bf16.mxu0 0
        %1395 = vmatpush1.bf16.msra.mxu0 0
        %1396 = vmatprep.mubr.bf16.mxu0 0
        %1397 = vmatmul.mubr.bf16.gmra.mrb[0].mxu0 %v1359
        %v1398 = vpop.f32.mrb[0].mxu0
        %v1399 = vadd.f32 %v1353, %v1398
        %v1400 = vpop.f32.mrb[0].mxu0
        %v1401 = vpop.f32.mrb[0].mxu0
        %v1402 = vpop.f32.mrb[0].mxu0
        %1403 = vdwg.mxu0
        %s1404 = scalar_lea.vmem %s6, 8
        %v1405 = vld [vmem:[%s1404] sm:$0xf]
        %v1407 = vsel %vm883, %v1307, 0
        %v1410 = vsel %vm1123, %v1405, 0
        %1412 = vmatprep.subr.bf16.mxu0 0
        %1413 = vmatpush1.bf16.msra.mxu0 %v1410
        %1414 = vmatprep.subr.bf16.mxu0 0
        %1415 = vmatpush1.bf16.msra.mxu0 0
        %1416 = vmatprep.subr.bf16.mxu0 0
        %1417 = vmatpush1.bf16.msra.mxu0 0
        %1418 = vmatprep.subr.bf16.mxu0 0
        %1419 = vmatpush1.bf16.msra.mxu0 0
        %1420 = vmatprep.subr.bf16.mxu0 0
        %1421 = vmatpush1.bf16.msra.mxu0 0
        %1422 = vmatprep.subr.bf16.mxu0 0
        %1423 = vmatpush1.bf16.msra.mxu0 0
        %1424 = vmatprep.subr.bf16.mxu0 0
        %1425 = vmatpush1.bf16.msra.mxu0 0
        %1426 = vmatprep.subr.bf16.mxu0 0
        %1427 = vmatpush1.bf16.msra.mxu0 0
        %1428 = vmatprep.subr.bf16.mxu0 0
        %1429 = vmatpush1.bf16.msra.mxu0 0
        %1430 = vmatprep.subr.bf16.mxu0 0
        %1431 = vmatpush1.bf16.msra.mxu0 0
        %1432 = vmatprep.subr.bf16.mxu0 0
        %1433 = vmatpush1.bf16.msra.mxu0 0
        %1434 = vmatprep.subr.bf16.mxu0 0
        %1435 = vmatpush1.bf16.msra.mxu0 0
        %1436 = vmatprep.subr.bf16.mxu0 0
        %1437 = vmatpush1.bf16.msra.mxu0 0
        %1438 = vmatprep.subr.bf16.mxu0 0
        %1439 = vmatpush1.bf16.msra.mxu0 0
        %1440 = vmatprep.subr.bf16.mxu0 0
        %1441 = vmatpush1.bf16.msra.mxu0 0
        %1442 = vmatprep.subr.bf16.mxu0 0
        %1443 = vmatpush1.bf16.msra.mxu0 0
        %1444 = vmatprep.mubr.bf16.mxu0 0
        %1445 = vmatmul.mubr.bf16.gmra.mrb[0].mxu0 %v1407
        %v1446 = vpop.f32.mrb[0].mxu0
        %v1447 = vadd.f32 0.0, %v1446
        %v1448 = vpop.f32.mrb[0].mxu0
        %v1449 = vpop.f32.mrb[0].mxu0
        %v1450 = vpop.f32.mrb[0].mxu0
        %1451 = vdwg.mxu0
        %v1452 = vadd.f32 %v1399, %v1447
        %s1453 = scalar_lea.vmem %s6, 12
        %v1454 = vld [vmem:[%s1453] sm:$0xf]
        %v1456 = vsel %vm883, %v1308, 0
        %v1459 = vsel %vm1123, %v1454, 0
        %1461 = vmatprep.subr.bf16.mxu0 0
        %1462 = vmatpush1.bf16.msra.mxu0 %v1459
        %1463 = vmatprep.subr.bf16.mxu0 0
        %1464 = vmatpush1.bf16.msra.mxu0 0
        %1465 = vmatprep.subr.bf16.mxu0 0
        %1466 = vmatpush1.bf16.msra.mxu0 0
        %1467 = vmatprep.subr.bf16.mxu0 0
        %1468 = vmatpush1.bf16.msra.mxu0 0
        %1469 = vmatprep.subr.bf16.mxu0 0
        %1470 = vmatpush1.bf16.msra.mxu0 0
        %1471 = vmatprep.subr.bf16.mxu0 0
        %1472 = vmatpush1.bf16.msra.mxu0 0
        %1473 = vmatprep.subr.bf16.mxu0 0
        %1474 = vmatpush1.bf16.msra.mxu0 0
        %1475 = vmatprep.subr.bf16.mxu0 0
        %1476 = vmatpush1.bf16.msra.mxu0 0
        %1477 = vmatprep.subr.bf16.mxu0 0
        %1478 = vmatpush1.bf16.msra.mxu0 0
        %1479 = vmatprep.subr.bf16.mxu0 0
        %1480 = vmatpush1.bf16.msra.mxu0 0
        %1481 = vmatprep.subr.bf16.mxu0 0
        %1482 = vmatpush1.bf16.msra.mxu0 0
        %1483 = vmatprep.subr.bf16.mxu0 0
        %1484 = vmatpush1.bf16.msra.mxu0 0
        %1485 = vmatprep.subr.bf16.mxu0 0
        %1486 = vmatpush1.bf16.msra.mxu0 0
        %1487 = vmatprep.subr.bf16.mxu0 0
        %1488 = vmatpush1.bf16.msra.mxu0 0
        %1489 = vmatprep.subr.bf16.mxu0 0
        %1490 = vmatpush1.bf16.msra.mxu0 0
        %1491 = vmatprep.subr.bf16.mxu0 0
        %1492 = vmatpush1.bf16.msra.mxu0 0
        %1493 = vmatprep.mubr.bf16.mxu0 0
        %1494 = vmatmul.mubr.bf16.gmra.mrb[0].mxu0 %v1456
        %v1495 = vpop.f32.mrb[0].mxu0
        %v1496 = vadd.f32 0.0, %v1495
        %v1497 = vpop.f32.mrb[0].mxu0
        %v1498 = vpop.f32.mrb[0].mxu0
        %v1499 = vpop.f32.mrb[0].mxu0
        %1500 = vdwg.mxu0
        %v1501 = vadd.f32 %v1452, %v1496
        %v1502 = vld [vmem:[#allocation13] sm:$0x1]
        %v1504 = vlaneseq
        %v1505 = vshrl.u32 %v1504, 7
        %v1506 = vsub.s32 0, %v1505
        %v1507 = vrot.slane %v1502, %v1506
        %v1509 = vadd.f32 %v1501, %v1507
        %v1510 = vadd.f32 %v673, %v1509
        %v1511 = vld [vmem:[#allocation14] sm:$0x1]
        %v1512 = vld [vmem:[#allocation16] sm:$0x1]
        %v1513 = vsel %vm810, %v1510, 0.0
        %1514 = vadd.xlane.f32.xlu0 %v1513
        %v1515 = vpop.xlane.xlu0 %1514
        %v1516 = vrcp.pop 32.0
        %v1517 = vmul.f32 %v1515, %v1516
        %v1518 = vsub.f32 %v1510, %v1517
        %v1519 = vmul.f32 %v1518, %v1518
        %v1520 = vsel %vm810, %v1519, 0.0
        %1521 = vadd.xlane.f32.xlu0 %v1520
        %v1522 = vpop.xlane.xlu0 %1521
        %v1523 = vmul.f32 %v1522, %v1516
        %v1524 = vadd.f32 %v1523, 1e-05
        %v1525 = vrsqrt.pop %v1524
        %v1526 = vmul.f32 %v1518, %v1525
        %v1528 = vlaneseq
        %v1529 = vshrl.u32 %v1528, 7
        %v1530 = vsub.s32 0, %v1529
        %v1531 = vrot.slane %v1511, %v1530
        %v1533 = vmul.f32 %v1526, %v1531
        %v1535 = vlaneseq
        %v1536 = vshrl.u32 %v1535, 7
        %v1537 = vsub.s32 0, %v1536
        %v1538 = vrot.slane %v1512, %v1537
        %v1540 = vadd.f32 %v1533, %v1538
        %v1541 = vpack.c.bf16 %v1540, %v1540
        %v1542 = vld [vmem:[%s10] sm:$0xf]
        %v1543 = vld [vmem:[%s10 + $0x4] sm:$0xf]
        %v1544 = vld [vmem:[%s10 + $0x8] sm:$0xf]
        %v1545 = vld [vmem:[%s10 + $0xc] sm:$0xf]
        %v1546 = vld [vmem:[%s11] sm:$0x1]
        %v1548 = vlaneseq
        %v1549 = vshrl.u32 %v1548, 7
        %v1550 = vsub.s32 0, %v1549
        %v1551 = vrot.slane %v1546, %v1550
        %v1557 = vunpack.c.l.b16 %v1542
        %v1558 = vunpack.c.l.b16 %v1543
        %v1559 = vunpack.c.l.b16 %v1544
        %v1560 = vunpack.c.l.b16 %v1545
        %v1561 = vpack.c.b16 %v1558, %v1557
        %v1562 = vpack.c.b16 %v1560, %v1559
        %v1566 = vsel %vm810, %v1541, 0
        %1568 = vmatprep.subr.bf16.mxu0 0
        %1569 = vmatpush1.bf16.msra.mxu0 %v1561
        %1570 = vmatprep.subr.bf16.mxu0 0
        %1571 = vmatpush1.bf16.msra.mxu0 %v1562
        %1572 = vmatprep.subr.bf16.mxu0 0
        %1573 = vmatpush1.bf16.msra.mxu0 0
        %1574 = vmatprep.subr.bf16.mxu0 0
        %1575 = vmatpush1.bf16.msra.mxu0 0
        %1576 = vmatprep.subr.bf16.mxu0 0
        %1577 = vmatpush1.bf16.msra.mxu0 0
        %1578 = vmatprep.subr.bf16.mxu0 0
        %1579 = vmatpush1.bf16.msra.mxu0 0
        %1580 = vmatprep.subr.bf16.mxu0 0
        %1581 = vmatpush1.bf16.msra.mxu0 0
        %1582 = vmatprep.subr.bf16.mxu0 0
        %1583 = vmatpush1.bf16.msra.mxu0 0
        %1584 = vmatprep.subr.bf16.mxu0 0
        %1585 = vmatpush1.bf16.msra.mxu0 0
        %1586 = vmatprep.subr.bf16.mxu0 0
        %1587 = vmatpush1.bf16.msra.mxu0 0
        %1588 = vmatprep.subr.bf16.mxu0 0
        %1589 = vmatpush1.bf16.msra.mxu0 0
        %1590 = vmatprep.subr.bf16.mxu0 0
        %1591 = vmatpush1.bf16.msra.mxu0 0
        %1592 = vmatprep.subr.bf16.mxu0 0
        %1593 = vmatpush1.bf16.msra.mxu0 0
        %1594 = vmatprep.subr.bf16.mxu0 0
        %1595 = vmatpush1.bf16.msra.mxu0 0
        %1596 = vmatprep.subr.bf16.mxu0 0
        %1597 = vmatpush1.bf16.msra.mxu0 0
        %1598 = vmatprep.subr.bf16.mxu0 0
        %1599 = vmatpush1.bf16.msra.mxu0 0
        %1600 = vmatprep.mubr.bf16.mxu0 0
        %1601 = vmatmul.mubr.bf16.gmra.mrb[0].mxu0 %v1566
        %v1602 = vpop.f32.mrb[0].mxu0
        %v1603 = vadd.f32 %v1551, %v1602
        %v1604 = vpop.f32.mrb[0].mxu0
        %v1605 = vpop.f32.mrb[0].mxu0
        %v1606 = vpop.f32.mrb[0].mxu0
        %1607 = vdwg.mxu0
        %v1608 = vmin.f32 %v1603, 20.0
        %v1609 = vmul.f32 %v1608, 1.442695
        %v1610 = vpow.pop %v1609
        %v1611 = vadd.f32 %v1610, 2.0
        %v1612 = vmul.f32 %v1610, %v1611
        %v1613 = vadd.f32 %v1612, 2.0
        %v1614 = vrcp.pop %v1613
        %v1615 = vmul.f32 %v1612, %v1614
        %vm1616 = vcmp.gt.f32.partialorder %v1603, 20.0
        %v1617 = vmul.f32 %v1603, %v1615
        %v1618 = vsel %vm1616, %v1603, %v1617
        %v1619 = vpack.c.bf16 %v1618, %v1618
        %v1620 = vld [vmem:[#allocation17] sm:$0xf]
        %v1621 = vld [vmem:[#allocation17 + $0x4] sm:$0xf]
        %v1622 = vld [vmem:[#allocation17 + $0x8] sm:$0xf]
        %v1623 = vld [vmem:[#allocation17 + $0xc] sm:$0xf]
        %v1624 = vld [vmem:[%s13] sm:$0x1]
        %v1626 = vlaneseq
        %v1627 = vshrl.u32 %v1626, 7
        %v1628 = vsub.s32 0, %v1627
        %v1629 = vrot.slane %v1624, %v1628
        %v1635 = vunpack.c.l.b16 %v1620
        %v1636 = vunpack.c.l.b16 %v1621
        %v1637 = vunpack.c.l.b16 %v1622
        %v1638 = vunpack.c.l.b16 %v1623
        %v1639 = vpack.c.b16 %v1636, %v1635
        %v1640 = vpack.c.b16 %v1638, %v1637
        %v1644 = vsel %vm810, %v1619, 0
        %1646 = vmatprep.subr.bf16.mxu0 0
        %1647 = vmatpush1.bf16.msra.mxu0 %v1639
        %1648 = vmatprep.subr.bf16.mxu0 0
        %1649 = vmatpush1.bf16.msra.mxu0 %v1640
        %1650 = vmatprep.subr.bf16.mxu0 0
        %1651 = vmatpush1.bf16.msra.mxu0 0
        %1652 = vmatprep.subr.bf16.mxu0 0
        %1653 = vmatpush1.bf16.msra.mxu0 0
        %1654 = vmatprep.subr.bf16.mxu0 0
        %1655 = vmatpush1.bf16.msra.mxu0 0
        %1656 = vmatprep.subr.bf16.mxu0 0
        %1657 = vmatpush1.bf16.msra.mxu0 0
        %1658 = vmatprep.subr.bf16.mxu0 0
        %1659 = vmatpush1.bf16.msra.mxu0 0
        %1660 = vmatprep.subr.bf16.mxu0 0
        %1661 = vmatpush1.bf16.msra.mxu0 0
        %1662 = vmatprep.subr.bf16.mxu0 0
        %1663 = vmatpush1.bf16.msra.mxu0 0
        %1664 = vmatprep.subr.bf16.mxu0 0
        %1665 = vmatpush1.bf16.msra.mxu0 0
        %1666 = vmatprep.subr.bf16.mxu0 0
        %1667 = vmatpush1.bf16.msra.mxu0 0
        %1668 = vmatprep.subr.bf16.mxu0 0
        %1669 = vmatpush1.bf16.msra.mxu0 0
        %1670 = vmatprep.subr.bf16.mxu0 0
        %1671 = vmatpush1.bf16.msra.mxu0 0
        %1672 = vmatprep.subr.bf16.mxu0 0
        %1673 = vmatpush1.bf16.msra.mxu0 0
        %1674 = vmatprep.subr.bf16.mxu0 0
        %1675 = vmatpush1.bf16.msra.mxu0 0
        %1676 = vmatprep.subr.bf16.mxu0 0
        %1677 = vmatpush1.bf16.msra.mxu0 0
        %1678 = vmatprep.mubr.bf16.mxu0 0
        %1679 = vmatmul.mubr.bf16.gmra.mrb[0].mxu0 %v1644
        %v1680 = vpop.f32.mrb[0].mxu0
        %v1681 = vadd.f32 %v1629, %v1680
        %v1682 = vpop.f32.mrb[0].mxu0
        %v1683 = vpop.f32.mrb[0].mxu0
        %v1684 = vpop.f32.mrb[0].mxu0
        %1685 = vdwg.mxu0
        %v1686 = vadd.f32 %v1540, %v1681
        %v1687 = vld [vmem:[%s14] sm:$0x1]
        %v1688 = vld [vmem:[%s15] sm:$0x1]
        %v1689 = vsel %vm810, %v1686, 0.0
        %1690 = vadd.xlane.f32.xlu0 %v1689
        %v1691 = vpop.xlane.xlu0 %1690
        %v1692 = vmul.f32 %v1691, %v1516
        %v1693 = vsub.f32 %v1686, %v1692
        %v1694 = vmul.f32 %v1693, %v1693
        %v1695 = vsel %vm810, %v1694, 0.0
        %1696 = vadd.xlane.f32.xlu0 %v1695
        %v1697 = vpop.xlane.xlu0 %1696
        %v1698 = vmul.f32 %v1697, %v1516
        %v1699 = vadd.f32 %v1698, 1e-05
        %v1700 = vrsqrt.pop %v1699
        %v1701 = vmul.f32 %v1693, %v1700
        %v1703 = vlaneseq
        %v1704 = vshrl.u32 %v1703, 7
        %v1705 = vsub.s32 0, %v1704
        %v1706 = vrot.slane %v1687, %v1705
        %v1708 = vmul.f32 %v1701, %v1706
        %v1710 = vlaneseq
        %v1711 = vshrl.u32 %v1710, 7
        %v1712 = vsub.s32 0, %v1711
        %v1713 = vrot.slane %v1688, %v1712
        %v1715 = vadd.f32 %v1708, %v1713
        %1716 = vst.msk [vmem:[%s671] sm:$0xff] %vm810, %v1715
        %s1717 = sand.u32 %s409, 1
        %s1718 = scalar_lea.sflag [#allocation7], %s1717
        %s1719 = sand.u32 %s409, 1
        %s1720 = smul.addr %s1719, 8
        %s1721 = scalar_lea.vmem [#allocation19], %s1720
        // Predicated region
        $region121: #{tpu_custom_call.1} parent=83 // pred_check
          %p1722 = pneg %p419
        $region122: #{tpu_custom_call.1} parent=83 // pred_check_branch
          %1724 = sbr.rel (%p1722) target = $region124
        $region123: #{tpu_custom_call.1} parent=83 // pred_region
          %s1726 = ssub.s32 128, 128
          %1727 = vsyncadd %s1718, %s1726
          %s1728 = sadd.s32 %s44, %s43
          %s1729 = smul.addr %s1728, 128
          %s1730 = scalar_lea.hbm %s16, %s1729
          %s1732 = sshll.u32 %s1721, 4
          %s1733 = int_to_ptr.vmem [resolvable:$true] %s1732
          %1735 = dma.vmem_to_hbm [thread:$0]  %s1733, 128, %s1730, %s1718
        $region124: #{tpu_custom_call.1} parent=83 // pred_fallthru
          _
      $region84: #{tpu_custom_call.1} parent=5 // pred_fallthru
        _
      %p1736 = scmp.le.s32.totalorder 2, %s34
      // Predicated region
      $region125: #{tpu_custom_call.1} parent=5 // pred_check
        %p1737 = pneg %p1736
      $region126: #{tpu_custom_call.1} parent=5 // pred_check_branch
        %1739 = sbr.rel (%p1737) target = $region128
      $region127: #{tpu_custom_call.1} parent=5 // pred_region
        %s1740 = ssub.s32 %s34, 2
        // Predicated region
        $region129: #{tpu_custom_call.1} parent=127 // pred_check
          %p1741 = pneg %p425
        $region130: #{tpu_custom_call.1} parent=127 // pred_check_branch
          %1743 = sbr.rel (%p1741) target = $region132
        $region131: #{tpu_custom_call.1} parent=127 // pred_region
          %s1744 = sand.u32 %s410, 1
          %s1745 = scalar_lea.sflag [#allocation7], %s1744
          %s1746 = sand.u32 %s410, 1
          %s1747 = smul.addr %s1746, 8
          %s1748 = scalar_lea.vmem [#allocation19], %s1747
          %1749 = dma.done %s1745, 128
        $region132: #{tpu_custom_call.1} parent=127 // pred_fallthru
          _
      $region128: #{tpu_custom_call.1} parent=5 // pred_fallthru
        _
    $region6: #{tpu_custom_call.1} parent=1 // loop_footer
      %s38 = sadd.s32 1, %s34
    $region7: #{tpu_custom_call.1} parent=1 // loop_footer_branch
      %33 = sbr.rel target = $region3
    $region8: #{tpu_custom_call.1} parent=1 // loop_exit
      _
    %1750 = vsyncpa [#allocation6], 1
    %s1751 = scalar_lea.sflag [#allocation6], 1
    %1752 = vsyncpa %s1751, 1
    %1753 = vsyncpa [#allocation9], 1
    %s1754 = scalar_lea.sflag [#allocation9], 1
    %1755 = vsyncpa %s1754, 1
    %1756 = vsyncpa [#allocation12], 1
    %1757 = vsyncpa [#allocation15], 1
    %1758 = vsyncpa [#allocation18], 1
    %1759 = vsyncpa [#allocation7], 1
    %s1760 = scalar_lea.sflag [#allocation7], 1
    %1761 = vsyncpa %s1760, 1

</llo_original>
